<compile_context>
chip_gen: v7x
topology: tpu7x:2x2x1
jax: 0.10.0
libtpu: 0.0.40
codegen_flags: <defaults>
</compile_context>

<pallas_src>
import functools

import jax
import jax.numpy as jnp
import numpy as np
from jax.experimental import pallas as pl
from jax.experimental.pallas import tpu as pltpu

_LANE = 128
_SUBLANE = 8
# 48 MiB: above the 16/32 MiB scoped defaults (v5e / v6e) yet <= ~56 MiB so it still
# compiles on v7x (64 MiB physical VMEM per TensorCore).  The tile budgets below keep
# actual usage far under this; the limit is just headroom for double buffering.
_VMEM_LIMIT_BYTES = 48 * 1024 * 1024
_IM2COL_MAX_K = 512  # fold KH*KW into the contraction only while K stays small


def _round_up(x, m):
    return -(-x // m) * m


def _pick_tile_rows(total_rows, bytes_per_row, budget_bytes, cap=None):
    """Largest divisor of total_rows whose tile fits the byte budget (and row cap)."""
    limit = total_rows if cap is None else max(1, min(total_rows, int(cap)))
    best = 1
    for d in range(1, limit + 1):
        if total_rows % d == 0 and d * bytes_per_row <= budget_bytes:
            best = d
    return best


def _relu_stats_epilogue(acc, y_ref, ssum_ref, ssq_ref, th, wo_pad, wo):
    """Shared conv epilogue: ReLU, mask padded W columns, bf16 store, f32 BN partials."""
    cpad = acc.shape[-1]
    y = jnp.maximum(acc, 0.0).reshape(th, wo_pad, cpad)
    if wo_pad != wo:  # zero the W-alignment padding so it does not pollute the stats
        col = jax.lax.broadcasted_iota(jnp.int32, (1, wo_pad, 1), 1)
        y = jnp.where(col < wo, y, 0.0)
    y_ref[...] = y.reshape(1, th, wo_pad, cpad).astype(y_ref.dtype)
    # Per-(image, H-tile) partial sums in f32, taken from the f32 accumulator (not the
    # bf16 store).  Blocked partials keep each f32 accumulation short, mitigating the
    # E[y^2]-E[y]^2 cancellation concern without a second full pass over y.
    ssum_ref[...] = jnp.sum(y, axis=(0, 1)).reshape(1, 1, 1, cpad)
    ssq_ref[...] = jnp.sum(y * y, axis=(0, 1)).reshape(1, 1, 1, cpad)


def conv_im2col_relu_stats_kernel(x_ref, w_ref, y_ref, ssum_ref, ssq_ref, *, wo):
    # x_ref: (1, TH, Wo_pad, K) bf16 im2col tile; w_ref: (K, Cpad) bf16.
    _, th, wo_pad, k = x_ref.shape
    patches = x_ref[...].reshape(th * wo_pad, k)
    acc = jnp.dot(patches, w_ref[...], preferred_element_type=jnp.float32)
    _relu_stats_epilogue(acc, y_ref, ssum_ref, ssq_ref, th, wo_pad, wo)


def conv_taps_relu_stats_kernel(x_ref, w_ref, y_ref, ssum_ref, ssq_ref, *,
                                th, wo, wo_pad, kh, kw):
    # x_ref: (1, Hp, Wp, Cin) bf16 whole padded image (its block index ignores the h
    #        grid axis, so it is DMA'd once per image and revisited across H-tiles).
    # w_ref: (KH*KW, Cin, Cpad) bf16.
    cin = x_ref.shape[3]
    h0 = pl.program_id(1) * th
    acc = None
    for dy in range(kh):                                     # static unroll over taps
        rows = x_ref[0, pl.ds(h0 + dy, th)]                  # (TH, Wp, Cin): H slice only
        for dx in range(kw):
            patch = rows[:, dx:dx + wo_pad, :].reshape(th * wo_pad, cin)
            part = jnp.dot(patch, w_ref[dy * kw + dx],
                           preferred_element_type=jnp.float32)
            acc = part if acc is None else acc + part
    _relu_stats_epilogue(acc, y_ref, ssum_ref, ssq_ref, th, wo_pad, wo)


def bn_apply_kernel(y_ref, scale_ref, shift_ref, out_ref):
    # Pure streaming FMA: bf16 load -> f32 scale/shift -> lane-dense f32 store.
    cpad = out_ref.shape[-1]
    s = scale_ref[...].reshape(1, 1, 1, cpad)
    b = shift_ref[...].reshape(1, 1, 1, cpad)
    out_ref[...] = y_ref[...].astype(jnp.float32) * s + b


def conv_block_forward(x_nchw, weight_oihw, gamma, beta, *, padding=1, eps=1e-5,
                       out_layout="NCHW", conv_tile_rows=None, bn_tile_rows=None):
    """ConvBlock forward: Conv2d(no bias, stride=1, dilation=1) -> ReLU -> BatchNorm2d
    (training-mode batch statistics), as two Pallas TPU kernels."""
    N, Cin, H, W = x_nchw.shape
    Cout, Cin_w, KH, KW = weight_oihw.shape
    assert Cin_w == Cin
    ph, pw = (padding, padding) if isinstance(padding, int) else tuple(padding)

    Cpad = _round_up(Cout, _LANE)
    Hp = H + 2 * ph
    Wp0 = W + 2 * pw
    Ho = Hp - KH + 1
    Wo = Wp0 - KW + 1
    Wo_pad = _round_up(Wo, _SUBLANE)       # keep in-kernel reshapes layout-preserving
    Wp = Wo_pad + KW - 1                   # input width needed for aligned W windows

    # ---- glue (plain JAX; fused by XLA when the wrapper is jitted) ----
    x = jnp.transpose(x_nchw, (0, 2, 3, 1)).astype(jnp.bfloat16)       # NCHW -> NHWC
    xp = jnp.pad(x, ((0, 0), (ph, ph), (pw, pw + (Wp - Wp0)), (0, 0)))
    w_hwio = jnp.transpose(weight_oihw, (2, 3, 1, 0))                  # (KH, KW, Cin, Cout)

    K = KH * KW * Cin
    fold = K <= _IM2COL_MAX_K or (KH == 1 and KW == 1)
    if fold:
        # Small Cin: full im2col fold -> single big-K matmul per tile, no halo needed.
        xin = jnp.concatenate(
            [xp[:, dy:dy + Ho, dx:dx + Wo_pad, :]
             for dy in range(KH) for dx in range(KW)], axis=-1)        # (N, Ho, Wo_pad, K)
        wk = jnp.pad(w_hwio.reshape(K, Cout),
                     ((0, 0), (0, Cpad - Cout))).astype(jnp.bfloat16)
        conv_row_bytes = Wo_pad * (K * 2 + Cpad * (2 + 4))   # x + y(bf16) + f32 acc
    else:
        # Large Cin: no HBM duplication; taps are built in-kernel from the padded image.
        xin = xp                                                        # (N, Hp, Wp, Cin)
        wk = jnp.pad(w_hwio.reshape(KH * KW, Cin, Cout),
                     ((0, 0), (0, 0), (0, Cpad - Cout))).astype(jnp.bfloat16)
        conv_row_bytes = Wo_pad * Cpad * (2 + 4)             # y(bf16) + f32 acc

    TH = _pick_tile_rows(Ho, conv_row_bytes, 2 << 20, cap=conv_tile_rows)
    nH = Ho // TH

    if fold:
        kern = functools.partial(conv_im2col_relu_stats_kernel, wo=Wo)
        in_specs = [
            pl.BlockSpec((1, TH, Wo_pad, K), lambda n, h: (n, h, 0, 0)),
            pl.BlockSpec((K, Cpad), lambda n, h: (0, 0)),
        ]
    else:
        kern = functools.partial(conv_taps_relu_stats_kernel,
                                 th=TH, wo=Wo, wo_pad=Wo_pad, kh=KH, kw=KW)
        in_specs = [
            pl.BlockSpec((1, Hp, Wp, Cin), lambda n, h: (n, 0, 0, 0)),
            pl.BlockSpec((KH * KW, Cin, Cpad), lambda n, h: (0, 0, 0)),
        ]

    # ---- kernel 1: conv + ReLU + BN partial stats, grid over (image, H-tile) ----
    y, ssum, ssq = pl.pallas_call(
        kern,
        out_shape=(
            jax.ShapeDtypeStruct((N, Ho, Wo_pad, Cpad), jnp.bfloat16),
            jax.ShapeDtypeStruct((N, nH, 1, Cpad), jnp.float32),
            jax.ShapeDtypeStruct((N, nH, 1, Cpad), jnp.float32),
        ),
        grid=(N, nH),
        in_specs=in_specs,
        out_specs=(
            pl.BlockSpec((1, TH, Wo_pad, Cpad), lambda n, h: (n, h, 0, 0)),
            pl.BlockSpec((1, 1, 1, Cpad), lambda n, h: (n, h, 0, 0)),
            pl.BlockSpec((1, 1, 1, Cpad), lambda n, h: (n, h, 0, 0)),
        ),
        compiler_params=pltpu.CompilerParams(
            dimension_semantics=("parallel", "parallel"),
            vmem_limit_bytes=_VMEM_LIMIT_BYTES),
        cost_estimate=pl.CostEstimate(
            flops=2 * N * Ho * Wo * KH * KW * Cin * Cout,
            transcendentals=0,
            bytes_accessed=int(xin.size) * 2 + int(wk.size) * 2
                           + N * Ho * Wo_pad * Cpad * 2 + 2 * N * nH * Cpad * 4),
    )(xin, wk)

    # ---- BatchNorm scale/shift from the partial sums (tiny, plain JAX) ----
    count = float(N * Ho * Wo)                   # real pixels only (padding is masked)
    mean = jnp.sum(ssum, axis=(0, 1, 2)) / count                           # (Cpad,)
    var = jnp.maximum(jnp.sum(ssq, axis=(0, 1, 2)) / count - mean * mean, 0.0)
    gamma_p = jnp.pad(gamma.astype(jnp.float32), (0, Cpad - Cout))
    beta_p = jnp.pad(beta.astype(jnp.float32), (0, Cpad - Cout))
    inv_std = jax.lax.rsqrt(var + eps)
    scale = (gamma_p * inv_std).reshape(1, Cpad)
    shift = (beta_p - mean * gamma_p * inv_std).reshape(1, Cpad)

    # ---- kernel 2: BatchNorm apply, large lane-dense tiles over (image, H-tile) ----
    TB = _pick_tile_rows(Ho, Wo_pad * Cpad * (2 + 4), 4 << 20, cap=bn_tile_rows)
    out = pl.pallas_call(
        bn_apply_kernel,
        out_shape=jax.ShapeDtypeStruct((N, Ho, Wo_pad, Cpad), jnp.float32),
        grid=(N, Ho // TB),
        in_specs=[
            pl.BlockSpec((1, TB, Wo_pad, Cpad), lambda n, i: (n, i, 0, 0)),
            pl.BlockSpec((1, Cpad), lambda n, i: (0, 0)),
            pl.BlockSpec((1, Cpad), lambda n, i: (0, 0)),
        ],
        out_specs=pl.BlockSpec((1, TB, Wo_pad, Cpad), lambda n, i: (n, i, 0, 0)),
        compiler_params=pltpu.CompilerParams(
            dimension_semantics=("parallel", "parallel"),
            vmem_limit_bytes=_VMEM_LIMIT_BYTES),
    )(y, scale, shift)

    out = out[:, :, :Wo, :Cout]           # drop W-alignment and Cout lane padding
    if out_layout == "NHWC":              # chained ConvBlocks: skip the NCHW round trip
        return out
    return jnp.transpose(out, (0, 3, 1, 2))   # PyTorch NCHW (fused with the slice by XLA)


def _reference(x_nchw, weight_oihw, gamma, beta, *, padding=1, eps=1e-5):
    """Pure-JAX reference mirroring the kernel numerics (bf16 conv inputs, f32 accumulate
    and stats, bf16 intermediate activation)."""
    ph, pw = (padding, padding) if isinstance(padding, int) else tuple(padding)
    x = jnp.transpose(x_nchw, (0, 2, 3, 1)).astype(jnp.bfloat16)
    w = jnp.transpose(weight_oihw, (2, 3, 1, 0)).astype(jnp.bfloat16)     # HWIO
    y = jax.lax.conv_general_dilated(
        x, w, window_strides=(1, 1), padding=((ph, ph), (pw, pw)),
        dimension_numbers=("NHWC", "HWIO", "NHWC"),
        preferred_element_type=jnp.float32)
    y = jnp.maximum(y, 0.0)
    mean = jnp.mean(y, axis=(0, 1, 2))
    var = jnp.maximum(jnp.mean(y * y, axis=(0, 1, 2)) - mean * mean, 0.0)  # biased (train)
    scale = gamma.astype(jnp.float32) * jax.lax.rsqrt(var + eps)
    shift = beta.astype(jnp.float32) - mean * scale
    yq = y.astype(jnp.bfloat16).astype(jnp.float32)     # kernel stores y in bf16
    out = yq * scale + shift
    return jnp.transpose(out, (0, 3, 1, 2))


def _check_case(key, *, n, cin, h, w, cout, k=3, padding=1, **fwd_kwargs):
    kx, kw_, kg, kb = jax.random.split(key, 4)
    x = jax.random.normal(kx, (n, cin, h, w), dtype=jnp.float32)
    fan_in = cin * k * k
    weight = jax.random.normal(kw_, (cout, cin, k, k), dtype=jnp.float32) * (2.0 / fan_in) ** 0.5
    gamma = 1.0 + 0.1 * jax.random.normal(kg, (cout,), dtype=jnp.float32)
    beta = 0.1 * jax.random.normal(kb, (cout,), dtype=jnp.float32)

    fwd = jax.jit(lambda a, b, c, d: conv_block_forward(
        a, b, c, d, padding=padding, **fwd_kwargs))
    out = jax.block_until_ready(fwd(x, weight, gamma, beta))
    ref = _reference(x, weight, gamma, beta, padding=padding)
    assert out.shape == ref.shape, (out.shape, ref.shape)
    err = float(jnp.max(jnp.abs(out - ref)))
    # Tolerance covers the bf16 intermediate; the reference mirrors it, so the only
    # residual is an occasional 1-ulp bf16 rounding-boundary difference post-norm.
    assert np.allclose(np.asarray(out), np.asarray(ref), rtol=2e-2, atol=3e-2), err
    return err


if __name__ == "__main__":
    root = jax.random.PRNGKey(0)
    k0, k1, k2 = jax.random.split(root, 3)

    # Main toy case (module defaults): im2col path, Wo already a multiple of 8.
    _check_case(k0, n=2, cin=4, h=16, w=16, cout=8)
    # Unaligned spatial size + forced small tiles: exercises the Wo padding/masking and
    # the multi-H-tile conv / BN grids.
    _check_case(k1, n=1, cin=4, h=12, w=14, cout=8, conv_tile_rows=4, bn_tile_rows=4)
    # Large-Cin path: un-folded input resident per image, in-kernel KHxKW taps,
    # 2 H-tiles (dynamic H offset).
    _check_case(k2, n=1, cin=128, h=8, w=8, cout=8, conv_tile_rows=4)

    print("KERNEL_OK")
</pallas_src>

<mosaic_0001>
module attributes {stable_mosaic.version = 11 : i64} {
  func.func @conv_im2col_relu_stats_kernel(%arg0: i32, %arg1: i32, %arg2: memref<1x16x16x36xbf16, #tpu.memory_space<vmem>>, %arg3: memref<36x128xbf16, #tpu.memory_space<vmem>>, %arg4: memref<1x16x16x128xbf16, #tpu.memory_space<vmem>>, %arg5: memref<1x1x1x128xf32, #tpu.memory_space<vmem>>, %arg6: memref<1x1x1x128xf32, #tpu.memory_space<vmem>>) attributes {dimension_semantics = [#tpu.dimension_semantics<parallel>, #tpu.dimension_semantics<parallel>], iteration_bounds = array<i64: 2, 1>, scalar_prefetch = 0 : i64, scratch_operands = 0 : i64, tpu.core_type = #tpu.core_type<tc>, window_params = [{transform_indices = @transform_0, window_bounds = array<i64: 1, 16, 16, 36>}, {pipeline_mode = #tpu.pipeline_mode<synchronous>, transform_indices = @transform_1, window_bounds = array<i64: 36, 128>}, {transform_indices = @transform_2, window_bounds = array<i64: 1, 16, 16, 128>}, {transform_indices = @transform_3, window_bounds = array<i64: 1, 1, 1, 128>}, {transform_indices = @transform_4, window_bounds = array<i64: 1, 1, 1, 128>}]} {
    %c0 = arith.constant 0 : index
    %c0_0 = arith.constant 0 : index
    %c0_1 = arith.constant 0 : index
    %c0_2 = arith.constant 0 : index
    %0 = vector.load %arg2[%c0, %c0_0, %c0_1, %c0_2] : memref<1x16x16x36xbf16, #tpu.memory_space<vmem>>, vector<1x16x16x36xbf16>
    %1 = vector.shape_cast %0 : vector<1x16x16x36xbf16> to vector<256x36xbf16>
    %c0_3 = arith.constant 0 : index
    %c0_4 = arith.constant 0 : index
    %2 = vector.load %arg3[%c0_3, %c0_4] : memref<36x128xbf16, #tpu.memory_space<vmem>>, vector<36x128xbf16>
    %cst = arith.constant dense<0.000000e+00> : vector<256x128xf32>
    %3 = tpu.matmul %1, %2, %cst {dimension_numbers = #tpu.dot_dimension_numbers<[1], [0], [0], [1], [0, 0, 1, 1], [], []>} : vector<256x36xbf16>, vector<36x128xbf16>, vector<256x128xf32> -> vector<256x128xf32>
    %cst_5 = arith.constant 0.000000e+00 : f32
    %4 = vector.broadcast %cst_5 : f32 to vector<256x128xf32>
    %5 = arith.maximumf %3, %4 : vector<256x128xf32>
    %6 = vector.shape_cast %5 : vector<256x128xf32> to vector<16x16x128xf32>
    %7 = vector.shape_cast %6 : vector<16x16x128xf32> to vector<1x16x16x128xf32>
    %8 = arith.truncf %7 : vector<1x16x16x128xf32> to vector<1x16x16x128xbf16>
    %c0_6 = arith.constant 0 : index
    %c0_7 = arith.constant 0 : index
    %c0_8 = arith.constant 0 : index
    %c0_9 = arith.constant 0 : index
    %9 = vector.load %arg4[%c0_6, %c0_7, %c0_8, %c0_9] : memref<1x16x16x128xbf16, #tpu.memory_space<vmem>>, vector<1x16x16x128xbf16>
    tpu.vector_store %arg4[%c0_6, %c0_7, %c0_8, %c0_9], %8 {strides = array<i32>} : memref<1x16x16x128xbf16, #tpu.memory_space<vmem>>, vector<1x16x16x128xbf16>,
    %cst_10 = arith.constant dense<0.000000e+00> : vector<128xf32>
    %10 = vector.multi_reduction <add>, %6, %cst_10 [0, 1] : vector<16x16x128xf32> to vector<128xf32>
    %11 = vector.shape_cast %10 : vector<128xf32> to vector<1x1x1x128xf32>
    %c0_11 = arith.constant 0 : index
    %c0_12 = arith.constant 0 : index
    %c0_13 = arith.constant 0 : index
    %c0_14 = arith.constant 0 : index
    %12 = vector.load %arg5[%c0_11, %c0_12, %c0_13, %c0_14] : memref<1x1x1x128xf32, #tpu.memory_space<vmem>>, vector<1x1x1x128xf32>
    tpu.vector_store %arg5[%c0_11, %c0_12, %c0_13, %c0_14], %11 {strides = array<i32>} : memref<1x1x1x128xf32, #tpu.memory_space<vmem>>, vector<1x1x1x128xf32>,
    %13 = arith.mulf %6, %6 : vector<16x16x128xf32>
    %cst_15 = arith.constant dense<0.000000e+00> : vector<128xf32>
    %14 = vector.multi_reduction <add>, %13, %cst_15 [0, 1] : vector<16x16x128xf32> to vector<128xf32>
    %15 = vector.shape_cast %14 : vector<128xf32> to vector<1x1x1x128xf32>
    %c0_16 = arith.constant 0 : index
    %c0_17 = arith.constant 0 : index
    %c0_18 = arith.constant 0 : index
    %c0_19 = arith.constant 0 : index
    %16 = vector.load %arg6[%c0_16, %c0_17, %c0_18, %c0_19] : memref<1x1x1x128xf32, #tpu.memory_space<vmem>>, vector<1x1x1x128xf32>
    tpu.vector_store %arg6[%c0_16, %c0_17, %c0_18, %c0_19], %15 {strides = array<i32>} : memref<1x1x1x128xf32, #tpu.memory_space<vmem>>, vector<1x1x1x128xf32>,
    return
  }
  func.func @transform_0(%arg0: i32, %arg1: i32) -> (i32, i32, i32, i32) {
    %c0_i32 = arith.constant 0 : i32
    %c0_i32_0 = arith.constant 0 : i32
    %c0_i32_1 = arith.constant 0 : i32
    return %arg0, %arg1, %c0_i32, %c0_i32_0 : i32, i32, i32, i32
  }
  func.func @transform_1(%arg0: i32, %arg1: i32) -> (i32, i32) {
    %c0_i32 = arith.constant 0 : i32
    %c0_i32_0 = arith.constant 0 : i32
    %c0_i32_1 = arith.constant 0 : i32
    return %c0_i32, %c0_i32_0 : i32, i32
  }
  func.func @transform_2(%arg0: i32, %arg1: i32) -> (i32, i32, i32, i32) {
    %c0_i32 = arith.constant 0 : i32
    %c0_i32_0 = arith.constant 0 : i32
    %c0_i32_1 = arith.constant 0 : i32
    return %arg0, %arg1, %c0_i32, %c0_i32_0 : i32, i32, i32, i32
  }
  func.func @transform_3(%arg0: i32, %arg1: i32) -> (i32, i32, i32, i32) {
    %c0_i32 = arith.constant 0 : i32
    %c0_i32_0 = arith.constant 0 : i32
    %c0_i32_1 = arith.constant 0 : i32
    return %arg0, %arg1, %c0_i32, %c0_i32_0 : i32, i32, i32, i32
  }
  func.func @transform_4(%arg0: i32, %arg1: i32) -> (i32, i32, i32, i32) {
    %c0_i32 = arith.constant 0 : i32
    %c0_i32_0 = arith.constant 0 : i32
    %c0_i32_1 = arith.constant 0 : i32
    return %arg0, %arg1, %c0_i32, %c0_i32_0 : i32, i32, i32, i32
  }
}

module attributes {stable_mosaic.version = 11 : i64} {
  func.func @bn_apply_kernel(%arg0: i32, %arg1: i32, %arg2: memref<1x16x16x128xbf16, #tpu.memory_space<vmem>>, %arg3: memref<1x128xf32, #tpu.memory_space<vmem>>, %arg4: memref<1x128xf32, #tpu.memory_space<vmem>>, %arg5: memref<1x16x16x128xf32, #tpu.memory_space<vmem>>) attributes {dimension_semantics = [#tpu.dimension_semantics<parallel>, #tpu.dimension_semantics<parallel>], iteration_bounds = array<i64: 2, 1>, scalar_prefetch = 0 : i64, scratch_operands = 0 : i64, tpu.core_type = #tpu.core_type<tc>, window_params = [{transform_indices = @transform_0, window_bounds = array<i64: 1, 16, 16, 128>}, {pipeline_mode = #tpu.pipeline_mode<synchronous>, transform_indices = @transform_1, window_bounds = array<i64: 1, 128>}, {pipeline_mode = #tpu.pipeline_mode<synchronous>, transform_indices = @transform_2, window_bounds = array<i64: 1, 128>}, {transform_indices = @transform_3, window_bounds = array<i64: 1, 16, 16, 128>}]} {
    %c0 = arith.constant 0 : index
    %c0_0 = arith.constant 0 : index
    %0 = vector.load %arg3[%c0, %c0_0] : memref<1x128xf32, #tpu.memory_space<vmem>>, vector<1x128xf32>
    %1 = vector.shape_cast %0 : vector<1x128xf32> to vector<1x1x1x128xf32>
    %c0_1 = arith.constant 0 : index
    %c0_2 = arith.constant 0 : index
    %2 = vector.load %arg4[%c0_1, %c0_2] : memref<1x128xf32, #tpu.memory_space<vmem>>, vector<1x128xf32>
    %3 = vector.shape_cast %2 : vector<1x128xf32> to vector<1x1x1x128xf32>
    %c0_3 = arith.constant 0 : index
    %c0_4 = arith.constant 0 : index
    %c0_5 = arith.constant 0 : index
    %c0_6 = arith.constant 0 : index
    %4 = vector.load %arg2[%c0_3, %c0_4, %c0_5, %c0_6] : memref<1x16x16x128xbf16, #tpu.memory_space<vmem>>, vector<1x16x16x128xbf16>
    %5 = arith.extf %4 : vector<1x16x16x128xbf16> to vector<1x16x16x128xf32>
    %6 = vector.broadcast %1 : vector<1x1x1x128xf32> to vector<1x16x16x128xf32>
    %7 = arith.mulf %5, %6 : vector<1x16x16x128xf32>
    %8 = vector.broadcast %3 : vector<1x1x1x128xf32> to vector<1x16x16x128xf32>
    %9 = arith.addf %7, %8 : vector<1x16x16x128xf32>
    %c0_7 = arith.constant 0 : index
    %c0_8 = arith.constant 0 : index
    %c0_9 = arith.constant 0 : index
    %c0_10 = arith.constant 0 : index
    %10 = vector.load %arg5[%c0_7, %c0_8, %c0_9, %c0_10] : memref<1x16x16x128xf32, #tpu.memory_space<vmem>>, vector<1x16x16x128xf32>
    tpu.vector_store %arg5[%c0_7, %c0_8, %c0_9, %c0_10], %9 {strides = array<i32>} : memref<1x16x16x128xf32, #tpu.memory_space<vmem>>, vector<1x16x16x128xf32>,
    return
  }
  func.func @transform_0(%arg0: i32, %arg1: i32) -> (i32, i32, i32, i32) {
    %c0_i32 = arith.constant 0 : i32
    %c0_i32_0 = arith.constant 0 : i32
    %c0_i32_1 = arith.constant 0 : i32
    return %arg0, %arg1, %c0_i32, %c0_i32_0 : i32, i32, i32, i32
  }
  func.func @transform_1(%arg0: i32, %arg1: i32) -> (i32, i32) {
    %c0_i32 = arith.constant 0 : i32
    %c0_i32_0 = arith.constant 0 : i32
    %c0_i32_1 = arith.constant 0 : i32
    return %c0_i32, %c0_i32_0 : i32, i32
  }
  func.func @transform_2(%arg0: i32, %arg1: i32) -> (i32, i32) {
    %c0_i32 = arith.constant 0 : i32
    %c0_i32_0 = arith.constant 0 : i32
    %c0_i32_1 = arith.constant 0 : i32
    return %c0_i32, %c0_i32_0 : i32, i32
  }
  func.func @transform_3(%arg0: i32, %arg1: i32) -> (i32, i32, i32, i32) {
    %c0_i32 = arith.constant 0 : i32
    %c0_i32_0 = arith.constant 0 : i32
    %c0_i32_1 = arith.constant 0 : i32
    return %arg0, %arg1, %c0_i32, %c0_i32_0 : i32, i32, i32, i32
  }
}

</mosaic_0001>

<llo_original>
// kernel: _lambda_.3
$region0: #{_lambda_.3}
  #allocation0 [shape = 'u32[]', space=smem, size = 0x4, offset = 0x4, fixed_abs, tag = 'smem constant byte address 0x4 - core index']
  #allocation1 [shape = 'u32[144,128]{1,0:T(1,128)}', space=vmem, size = 0x12000, scoped, tag = 'internal scratch']
  %s0 = inlined_call_operand.vmem [shape: bf16[2,16,16,128], index: 0, kind: input, shape index: {}]
  %s1 = inlined_call_operand.vmem [shape: f32[1,128], index: 1, kind: input, shape index: {}]
  %s2 = inlined_call_operand.vmem [shape: f32[1,128], index: 2, kind: input, shape index: {}]
  %s3 = inlined_call_operand.vmem [shape: f32[2,16,16,128], index: 3, kind: output, shape index: {}]
  %s4 = sld [smem:[#allocation0]]
  $region45: #{_lambda_.3} parent=0
    _
  %s6 = ssub.s32 1, %s4
  %s7 = scalar_select 0, %s6, %s4
  loop: start=0, step=1, limit=4
  $region2: #{_lambda_.3} parent=0 // loop_pre_header
    _
  $region3: #{_lambda_.3} parent=0 // loop_header
    %s9 = sphi 0, %s13
    %p10 = scmp.ge.s32.totalorder %s9, 4
    %s16 = sphi 0, %s28
    %s17 = sphi 0, %s24
    %s18 = sphi 0, %s16
    %s19 = sphi 0, %s17
    %s20 = sphi 0, %s18
    %s21 = sphi 0, %s19
    %s33 = sphi 0, %s35
    %s36 = sphi 0, %s33
    %s37 = sphi 0, %s36
    %s53 = sphi 0, %s37
    %s57 = sphi 0, %s57
    %s59 = sphi 0, %s57
    %s60 = sphi 0, %s59
    %s74 = sphi 0, %s60
    %s78 = sphi 0, %s78
    %s80 = sphi 0, %s78
    %s81 = sphi 0, %s80
    %s95 = sphi 0, %s81
    %s103 = sphi 0, %s105
    %s106 = sphi 0, %s103
    %s107 = sphi 0, %s106
    %s123 = sphi 0, %s107
  $region4: #{_lambda_.3} parent=0 // loop_header_branch
    %12 = sbr.rel (%p10) target = $region8
  $region5: #{_lambda_.3} parent=0 // loop_body
    %s14 = ssub.s32 %s9, 1
    %s15 = ssub.s32 %s9, 2
    %s22 = sadd.s32 1, %s17
    %p23 = scmp.ge.s32.totalorder %s22, 1
    %s24 = scalar_select %p23, 0, %s22
    %s25 = sadd.s32 1, %s16
    %s26 = scalar_select %p23, %s25, %s16
    %p27 = scmp.ge.s32.totalorder %s26, 2
    %s28 = scalar_select %p27, 0, %s26
    %s29 = ssub.s32 %s16, %s28
    %s30 = ssub.s32 %s17, %s24
    %s31 = sor.u32 %s29, %s30
    %p32 = scmp.eq.s32.totalorder %s31, 0
    %s34 = sadd.s32 %s33, 1
    %s35 = scalar_select %p32, %s33, %s34
    %p38 = pneg %p32
    %p39 = scmp.eq.s32.totalorder %s9, 1
    %p40 = por %p38, %p39
    %p41 = scmp.ne.s32.totalorder %s33, %s36
    %p42 = scmp.eq.s32.totalorder %s9, 0
    %p43 = por %p41, %p42
    %p44 = scmp.ne.s32.totalorder %s33, %s36
    %p45 = scmp.eq.s32.totalorder %s14, 1
    %p46 = por %p44, %p45
    %p47 = scmp.ne.s32.totalorder %s36, %s37
    %p48 = scmp.eq.s32.totalorder %s14, 0
    %p49 = por %p47, %p48
    %p50 = scmp.ne.s32.totalorder %s36, %s37
    %p51 = scmp.eq.s32.totalorder %s15, 1
    %p52 = por %p50, %p51
    %p54 = scmp.ne.s32.totalorder %s37, %s53
    %p55 = scmp.eq.s32.totalorder %s15, 0
    %p56 = por %p54, %p55
    %s58 = sadd.s32 %s57, 1
    %p61 = scmp.eq.s32.totalorder %s9, 1
    %p62 = scmp.ne.s32.totalorder %s57, %s59
    %p63 = scmp.eq.s32.totalorder %s9, 0
    %p64 = por %p62, %p63
    %p65 = scmp.ne.s32.totalorder %s57, %s59
    %p66 = scmp.eq.s32.totalorder %s14, 1
    %p67 = por %p65, %p66
    %p68 = scmp.ne.s32.totalorder %s59, %s60
    %p69 = scmp.eq.s32.totalorder %s14, 0
    %p70 = por %p68, %p69
    %p71 = scmp.ne.s32.totalorder %s59, %s60
    %p72 = scmp.eq.s32.totalorder %s15, 1
    %p73 = por %p71, %p72
    %p75 = scmp.ne.s32.totalorder %s60, %s74
    %p76 = scmp.eq.s32.totalorder %s15, 0
    %p77 = por %p75, %p76
    %s79 = sadd.s32 %s78, 1
    %p82 = scmp.eq.s32.totalorder %s9, 1
    %p83 = scmp.ne.s32.totalorder %s78, %s80
    %p84 = scmp.eq.s32.totalorder %s9, 0
    %p85 = por %p83, %p84
    %p86 = scmp.ne.s32.totalorder %s78, %s80
    %p87 = scmp.eq.s32.totalorder %s14, 1
    %p88 = por %p86, %p87
    %p89 = scmp.ne.s32.totalorder %s80, %s81
    %p90 = scmp.eq.s32.totalorder %s14, 0
    %p91 = por %p89, %p90
    %p92 = scmp.ne.s32.totalorder %s80, %s81
    %p93 = scmp.eq.s32.totalorder %s15, 1
    %p94 = por %p92, %p93
    %p96 = scmp.ne.s32.totalorder %s81, %s95
    %p97 = scmp.eq.s32.totalorder %s15, 0
    %p98 = por %p96, %p97
    %s99 = ssub.s32 %s16, %s28
    %s100 = ssub.s32 %s17, %s24
    %s101 = sor.u32 %s99, %s100
    %p102 = scmp.eq.s32.totalorder %s101, 0
    %s104 = sadd.s32 %s103, 1
    %s105 = scalar_select %p102, %s103, %s104
    %p108 = pneg %p102
    %p109 = scmp.eq.s32.totalorder %s9, 1
    %p110 = por %p108, %p109
    %p111 = scmp.ne.s32.totalorder %s103, %s106
    %p112 = scmp.eq.s32.totalorder %s9, 0
    %p113 = por %p111, %p112
    %p114 = scmp.ne.s32.totalorder %s103, %s106
    %p115 = scmp.eq.s32.totalorder %s14, 1
    %p116 = por %p114, %p115
    %p117 = scmp.ne.s32.totalorder %s106, %s107
    %p118 = scmp.eq.s32.totalorder %s14, 0
    %p119 = por %p117, %p118
    %p120 = scmp.ne.s32.totalorder %s106, %s107
    %p121 = scmp.eq.s32.totalorder %s15, 1
    %p122 = por %p120, %p121
    %p124 = scmp.ne.s32.totalorder %s107, %s123
    %p125 = scmp.eq.s32.totalorder %s15, 0
    %p126 = por %p124, %p125
    %p127 = scmp.le.s32.totalorder 1, %s9
    %p128 = scmp.lt.s32.totalorder %s9, 3
    %p129 = pnand %p127, %p128
    %p130 = pneg %p129
    // Predicated region
    $region9: #{_lambda_.3} parent=5 // pred_check
      _
    $region10: #{_lambda_.3} parent=5 // pred_check_branch
      %132 = sbr.rel (%p129) target = $region12
    $region11: #{_lambda_.3} parent=5 // pred_region
      %s133 = ssub.s32 %s9, 1
      // Predicated region
      $region13: #{_lambda_.3} parent=11 // pred_check
        %p134 = pneg %p70
      $region14: #{_lambda_.3} parent=11 // pred_check_branch
        %136 = sbr.rel (%p134) target = $region16
      $region15: #{_lambda_.3} parent=11 // pred_region
        _
      $region16: #{_lambda_.3} parent=11 // pred_fallthru
        _
      // Predicated region
      $region17: #{_lambda_.3} parent=11 // pred_check
        %p137 = pneg %p91
      $region18: #{_lambda_.3} parent=11 // pred_check_branch
        %139 = sbr.rel (%p137) target = $region20
      $region19: #{_lambda_.3} parent=11 // pred_region
        _
      $region20: #{_lambda_.3} parent=11 // pred_fallthru
        _
    $region12: #{_lambda_.3} parent=5 // pred_fallthru
      _
    %p140 = scmp.lt.s32.totalorder %s9, 2
    // Predicated region
    $region21: #{_lambda_.3} parent=5 // pred_check
      %p141 = pneg %p140
    $region22: #{_lambda_.3} parent=5 // pred_check_branch
      %143 = sbr.rel (%p141) target = $region24
    $region23: #{_lambda_.3} parent=5 // pred_region
      // Predicated region
      $region25: #{_lambda_.3} parent=23 // pred_check
        %p144 = pneg %p43
      $region26: #{_lambda_.3} parent=23 // pred_check_branch
        %146 = sbr.rel (%p144) target = $region28
      $region27: #{_lambda_.3} parent=23 // pred_region
        %s147 = smul.u32 16, %s17
        %p148 = scmp.lt.s32.totalorder %s16, 1
        %s149 = scalar_select %p148, %s16, 1
        %p150 = scmp.lt.s32.totalorder %s147, 15
        %s151 = scalar_select %p150, %s147, 15
        %s152 = smul.addr %s151, 2
        %s153 = smul.addr %s149, 32
        %s154 = sadd.s32 %s152, %s153
        %s155 = smul.addr %s154, 4
        %s156 = scalar_lea.vmem %s0, %s155
        %s157 = smul.u32 16, %s17
      $region28: #{_lambda_.3} parent=23 // pred_fallthru
        _
    $region24: #{_lambda_.3} parent=5 // pred_fallthru
      _
    %p158 = scmp.le.s32.totalorder 1, %s9
    %p159 = scmp.lt.s32.totalorder %s9, 3
    %p160 = pnand %p158, %p159
    %p161 = pneg %p160
    // Predicated region
    $region29: #{_lambda_.3} parent=5 // pred_check
      _
    $region30: #{_lambda_.3} parent=5 // pred_check_branch
      %163 = sbr.rel (%p160) target = $region32
    $region31: #{_lambda_.3} parent=5 // pred_region
      %s164 = ssub.s32 %s9, 1
      %s165 = smul.u32 16, %s19
      %p166 = scmp.lt.s32.totalorder %s18, 1
      %s167 = scalar_select %p166, %s18, 1
      %p168 = scmp.lt.s32.totalorder %s165, 15
      %s169 = scalar_select %p168, %s165, 15
      %s170 = smul.addr %s169, 2
      %s171 = smul.addr %s167, 32
      %s172 = sadd.s32 %s170, %s171
      %s173 = smul.addr %s172, 4
      %s174 = scalar_lea.vmem %s0, %s173
      %p175 = pneg %p49
      %p176 = pneg %p46
      %p177 = pneg %p70
      %p178 = pneg %p67
      %p179 = pneg %p91
      %p180 = pneg %p88
      %p181 = pneg %p119
      %p182 = pneg %p116
      %s183 = smul.u32 16, %s19
      %p184 = scmp.lt.s32.totalorder %s18, 1
      %s185 = scalar_select %p184, %s18, 1
      %p186 = scmp.lt.s32.totalorder %s183, 15
      %s187 = scalar_select %p186, %s183, 15
      %s188 = smul.addr %s187, 2
      %s189 = smul.addr %s185, 32
      %s190 = sadd.s32 %s188, %s189
      %s191 = smul.addr %s190, 8
      %s192 = scalar_lea.vmem %s3, %s191
      %s193 = smul.u32 16, %s19
      %p194 = scmp.lt.s32.totalorder %s18, 1
      %s195 = scalar_select %p194, %s18, 1
      %p196 = scmp.lt.s32.totalorder %s193, 15
      %s197 = scalar_select %p196, %s193, 15
      %s198 = smul.addr %s197, 2
      %s199 = smul.addr %s195, 32
      %s200 = sadd.s32 %s198, %s199
      %s201 = smul.addr %s200, 4
      %s202 = scalar_lea.vmem %s0, %s201
      %s203 = smul.u32 16, %s19
      %s204 = smul.u32 16, %s19
      %p205 = scmp.lt.s32.totalorder %s18, 1
      %s206 = scalar_select %p205, %s18, 1
      %p207 = scmp.lt.s32.totalorder %s204, 15
      %s208 = scalar_select %p207, %s204, 15
      %s209 = smul.addr %s208, 2
      %s210 = smul.addr %s206, 32
      %s211 = sadd.s32 %s209, %s210
      %s212 = smul.addr %s211, 8
      %s213 = scalar_lea.vmem %s3, %s212
      %s214 = smul.u32 16, %s19
      %v215 = vld [vmem:[%s1] sm:$0x1]
      %v216 = vld [vmem:[%s2] sm:$0x1]
      %v217 = vld [vmem:[%s202] sm:$0xf]
      %v218 = vld [vmem:[%s202 + $0x4] sm:$0xf]
      %v219 = vld [vmem:[%s202 + $0x8] sm:$0xf]
      %v220 = vld [vmem:[%s202 + $0xc] sm:$0xf]
      %v221 = vld [vmem:[%s202 + $0x10] sm:$0xf]
      %v222 = vld [vmem:[%s202 + $0x14] sm:$0xf]
      %v223 = vld [vmem:[%s202 + $0x18] sm:$0xf]
      %v224 = vld [vmem:[%s202 + $0x1c] sm:$0xf]
      %v225 = vld [vmem:[%s202 + $0x20] sm:$0xf]
      %v226 = vld [vmem:[%s202 + $0x24] sm:$0xf]
      %v227 = vld [vmem:[%s202 + $0x28] sm:$0xf]
      %v228 = vld [vmem:[%s202 + $0x2c] sm:$0xf]
      %v229 = vld [vmem:[%s202 + $0x30] sm:$0xf]
      %v230 = vld [vmem:[%s202 + $0x34] sm:$0xf]
      %v231 = vld [vmem:[%s202 + $0x38] sm:$0xf]
      %v232 = vld [vmem:[%s202 + $0x3c] sm:$0xf]
      %v233 = vld [vmem:[%s202 + $0x40] sm:$0xf]
      %v234 = vld [vmem:[%s202 + $0x44] sm:$0xf]
      %v235 = vld [vmem:[%s202 + $0x48] sm:$0xf]
      %v236 = vld [vmem:[%s202 + $0x4c] sm:$0xf]
      %v237 = vld [vmem:[%s202 + $0x50] sm:$0xf]
      %v238 = vld [vmem:[%s202 + $0x54] sm:$0xf]
      %v239 = vld [vmem:[%s202 + $0x58] sm:$0xf]
      %v240 = vld [vmem:[%s202 + $0x5c] sm:$0xf]
      %v241 = vld [vmem:[%s202 + $0x60] sm:$0xf]
      %v242 = vld [vmem:[%s202 + $0x64] sm:$0xf]
      %v243 = vld [vmem:[%s202 + $0x68] sm:$0xf]
      %v244 = vld [vmem:[%s202 + $0x6c] sm:$0xf]
      %v245 = vld [vmem:[%s202 + $0x70] sm:$0xf]
      %v246 = vld [vmem:[%s202 + $0x74] sm:$0xf]
      %v247 = vld [vmem:[%s202 + $0x78] sm:$0xf]
      %v248 = vld [vmem:[%s202 + $0x7c] sm:$0xf]
      %v249 = vunpack.c.l.bf16 %v217
      %v250 = vunpack.c.l.bf16 %v218
      %v251 = vunpack.c.l.bf16 %v219
      %v252 = vunpack.c.l.bf16 %v220
      %v253 = vunpack.c.l.bf16 %v221
      %v254 = vunpack.c.l.bf16 %v222
      %v255 = vunpack.c.l.bf16 %v223
      %v256 = vunpack.c.l.bf16 %v224
      %v257 = vunpack.c.l.bf16 %v225
      %v258 = vunpack.c.l.bf16 %v226
      %v259 = vunpack.c.l.bf16 %v227
      %v260 = vunpack.c.l.bf16 %v228
      %v261 = vunpack.c.l.bf16 %v229
      %v262 = vunpack.c.l.bf16 %v230
      %v263 = vunpack.c.l.bf16 %v231
      %v264 = vunpack.c.l.bf16 %v232
      %v265 = vunpack.c.l.bf16 %v233
      %v266 = vunpack.c.l.bf16 %v234
      %v267 = vunpack.c.l.bf16 %v235
      %v268 = vunpack.c.l.bf16 %v236
      %v269 = vunpack.c.l.bf16 %v237
      %v270 = vunpack.c.l.bf16 %v238
      %v271 = vunpack.c.l.bf16 %v239
      %v272 = vunpack.c.l.bf16 %v240
      %v273 = vunpack.c.l.bf16 %v241
      %v274 = vunpack.c.l.bf16 %v242
      %v275 = vunpack.c.l.bf16 %v243
      %v276 = vunpack.c.l.bf16 %v244
      %v277 = vunpack.c.l.bf16 %v245
      %v278 = vunpack.c.l.bf16 %v246
      %v279 = vunpack.c.l.bf16 %v247
      %v280 = vunpack.c.l.bf16 %v248
      %v282 = vlaneseq
      %v283 = vshrl.u32 %v282, 7
      %v284 = vsub.s32 0, %v283
      %v285 = vrot.slane %v215, %v284
      %v287 = vmul.f32 %v249, %v285
      %v288 = vmul.f32 %v250, %v285
      %v289 = vmul.f32 %v251, %v285
      %v290 = vmul.f32 %v252, %v285
      %v291 = vmul.f32 %v253, %v285
      %v292 = vmul.f32 %v254, %v285
      %v293 = vmul.f32 %v255, %v285
      %v294 = vmul.f32 %v256, %v285
      %v295 = vmul.f32 %v257, %v285
      %v296 = vmul.f32 %v258, %v285
      %v297 = vmul.f32 %v259, %v285
      %v298 = vmul.f32 %v260, %v285
      %v299 = vmul.f32 %v261, %v285
      %v300 = vmul.f32 %v262, %v285
      %v301 = vmul.f32 %v263, %v285
      %v302 = vmul.f32 %v264, %v285
      %v303 = vmul.f32 %v265, %v285
      %v304 = vmul.f32 %v266, %v285
      %v305 = vmul.f32 %v267, %v285
      %v306 = vmul.f32 %v268, %v285
      %v307 = vmul.f32 %v269, %v285
      %v308 = vmul.f32 %v270, %v285
      %v309 = vmul.f32 %v271, %v285
      %v310 = vmul.f32 %v272, %v285
      %v311 = vmul.f32 %v273, %v285
      %v312 = vmul.f32 %v274, %v285
      %v313 = vmul.f32 %v275, %v285
      %v314 = vmul.f32 %v276, %v285
      %v315 = vmul.f32 %v277, %v285
      %v316 = vmul.f32 %v278, %v285
      %v317 = vmul.f32 %v279, %v285
      %v318 = vmul.f32 %v280, %v285
      %v320 = vlaneseq
      %v321 = vshrl.u32 %v320, 7
      %v322 = vsub.s32 0, %v321
      %v323 = vrot.slane %v216, %v322
      %v325 = vadd.f32 %v287, %v323
      %v326 = vadd.f32 %v288, %v323
      %v327 = vadd.f32 %v289, %v323
      %v328 = vadd.f32 %v290, %v323
      %v329 = vadd.f32 %v291, %v323
      %v330 = vadd.f32 %v292, %v323
      %v331 = vadd.f32 %v293, %v323
      %v332 = vadd.f32 %v294, %v323
      %v333 = vadd.f32 %v295, %v323
      %v334 = vadd.f32 %v296, %v323
      %v335 = vadd.f32 %v297, %v323
      %v336 = vadd.f32 %v298, %v323
      %v337 = vadd.f32 %v299, %v323
      %v338 = vadd.f32 %v300, %v323
      %v339 = vadd.f32 %v301, %v323
      %v340 = vadd.f32 %v302, %v323
      %v341 = vadd.f32 %v303, %v323
      %v342 = vadd.f32 %v304, %v323
      %v343 = vadd.f32 %v305, %v323
      %v344 = vadd.f32 %v306, %v323
      %v345 = vadd.f32 %v307, %v323
      %v346 = vadd.f32 %v308, %v323
      %v347 = vadd.f32 %v309, %v323
      %v348 = vadd.f32 %v310, %v323
      %v349 = vadd.f32 %v311, %v323
      %v350 = vadd.f32 %v312, %v323
      %v351 = vadd.f32 %v313, %v323
      %v352 = vadd.f32 %v314, %v323
      %v353 = vadd.f32 %v315, %v323
      %v354 = vadd.f32 %v316, %v323
      %v355 = vadd.f32 %v317, %v323
      %v356 = vadd.f32 %v318, %v323
      %357 = vst [vmem:[%s213] sm:$0xff] %v325
      %358 = vst [vmem:[%s213 + $0x8] sm:$0xff] %v326
      %359 = vst [vmem:[%s213 + $0x10] sm:$0xff] %v327
      %360 = vst [vmem:[%s213 + $0x18] sm:$0xff] %v328
      %361 = vst [vmem:[%s213 + $0x20] sm:$0xff] %v329
      %362 = vst [vmem:[%s213 + $0x28] sm:$0xff] %v330
      %363 = vst [vmem:[%s213 + $0x30] sm:$0xff] %v331
      %364 = vst [vmem:[%s213 + $0x38] sm:$0xff] %v332
      %365 = vst [vmem:[%s213 + $0x40] sm:$0xff] %v333
      %366 = vst [vmem:[%s213 + $0x48] sm:$0xff] %v334
      %367 = vst [vmem:[%s213 + $0x50] sm:$0xff] %v335
      %368 = vst [vmem:[%s213 + $0x58] sm:$0xff] %v336
      %369 = vst [vmem:[%s213 + $0x60] sm:$0xff] %v337
      %370 = vst [vmem:[%s213 + $0x68] sm:$0xff] %v338
      %371 = vst [vmem:[%s213 + $0x70] sm:$0xff] %v339
      %372 = vst [vmem:[%s213 + $0x78] sm:$0xff] %v340
      %373 = vst [vmem:[%s213 + $0x80] sm:$0xff] %v341
      %374 = vst [vmem:[%s213 + $0x88] sm:$0xff] %v342
      %375 = vst [vmem:[%s213 + $0x90] sm:$0xff] %v343
      %376 = vst [vmem:[%s213 + $0x98] sm:$0xff] %v344
      %377 = vst [vmem:[%s213 + $0xa0] sm:$0xff] %v345
      %378 = vst [vmem:[%s213 + $0xa8] sm:$0xff] %v346
      %379 = vst [vmem:[%s213 + $0xb0] sm:$0xff] %v347
      %380 = vst [vmem:[%s213 + $0xb8] sm:$0xff] %v348
      %381 = vst [vmem:[%s213 + $0xc0] sm:$0xff] %v349
      %382 = vst [vmem:[%s213 + $0xc8] sm:$0xff] %v350
      %383 = vst [vmem:[%s213 + $0xd0] sm:$0xff] %v351
      %384 = vst [vmem:[%s213 + $0xd8] sm:$0xff] %v352
      %385 = vst [vmem:[%s213 + $0xe0] sm:$0xff] %v353
      %386 = vst [vmem:[%s213 + $0xe8] sm:$0xff] %v354
      %387 = vst [vmem:[%s213 + $0xf0] sm:$0xff] %v355
      %388 = vst [vmem:[%s213 + $0xf8] sm:$0xff] %v356
      %s389 = smul.u32 16, %s19
      %p390 = scmp.lt.s32.totalorder %s18, 1
      %s391 = scalar_select %p390, %s18, 1
      %p392 = scmp.lt.s32.totalorder %s389, 15
      %s393 = scalar_select %p392, %s389, 15
      %s394 = smul.addr %s393, 2
      %s395 = smul.addr %s391, 32
      %s396 = sadd.s32 %s394, %s395
      %s397 = smul.addr %s396, 8
      %s398 = scalar_lea.vmem %s3, %s397
      // Predicated region
      $region33: #{_lambda_.3} parent=31 // pred_check
        %p399 = pneg %p116
      $region34: #{_lambda_.3} parent=31 // pred_check_branch
        %401 = sbr.rel (%p399) target = $region36
      $region35: #{_lambda_.3} parent=31 // pred_region
        %s402 = smul.u32 16, %s19
      $region36: #{_lambda_.3} parent=31 // pred_fallthru
        _
    $region32: #{_lambda_.3} parent=5 // pred_fallthru
      _
    %p403 = scmp.le.s32.totalorder 2, %s9
    // Predicated region
    $region37: #{_lambda_.3} parent=5 // pred_check
      %p404 = pneg %p403
    $region38: #{_lambda_.3} parent=5 // pred_check_branch
      %406 = sbr.rel (%p404) target = $region40
    $region39: #{_lambda_.3} parent=5 // pred_region
      %s407 = ssub.s32 %s9, 2
      // Predicated region
      $region41: #{_lambda_.3} parent=39 // pred_check
        %p408 = pneg %p122
      $region42: #{_lambda_.3} parent=39 // pred_check_branch
        %410 = sbr.rel (%p408) target = $region44
      $region43: #{_lambda_.3} parent=39 // pred_region
        %s411 = smul.u32 16, %s21
        %p412 = scmp.lt.s32.totalorder %s20, 1
        %s413 = scalar_select %p412, %s20, 1
        %p414 = scmp.lt.s32.totalorder %s411, 15
        %s415 = scalar_select %p414, %s411, 15
        %s416 = smul.addr %s415, 2
        %s417 = smul.addr %s413, 32
        %s418 = sadd.s32 %s416, %s417
        %s419 = smul.addr %s418, 8
        %s420 = scalar_lea.vmem %s3, %s419
      $region44: #{_lambda_.3} parent=39 // pred_fallthru
        _
    $region40: #{_lambda_.3} parent=5 // pred_fallthru
      _
  $region6: #{_lambda_.3} parent=0 // loop_footer
    %s13 = sadd.s32 1, %s9
  $region7: #{_lambda_.3} parent=0 // loop_footer_branch
    %8 = sbr.rel target = $region3
  $region8: #{_lambda_.3} parent=0 // loop_exit
    _

// kernel: _lambda_.2
$region0: #{_lambda_.2}
  #allocation0 [shape = 'u32[]', space=smem, size = 0x4, offset = 0x4, fixed_abs, tag = 'smem constant byte address 0x4 - core index']
  #allocation1 [shape = 'u32[144,128]{1,0:T(1,128)}', space=vmem, size = 0x12000, scoped, tag = 'internal scratch']
  %s0 = inlined_call_operand.vmem [shape: bf16[2,16,16,36], index: 0, kind: input, shape index: {}]
  %s1 = inlined_call_operand.vmem [shape: bf16[36,128], index: 1, kind: input, shape index: {}]
  %s2 = inlined_call_operand.vmem [shape: bf16[2,16,16,128], index: 2, kind: output, shape index: {0}]
  %s3 = inlined_call_operand.vmem [shape: f32[2,1,1,128], index: 3, kind: output, shape index: {1}]
  %s4 = inlined_call_operand.vmem [shape: f32[2,1,1,128], index: 4, kind: output, shape index: {2}]
  %5 = xla_tuple %s2, %s3, %s4
  %s6 = sld [smem:[#allocation0]]
  $region57: #{_lambda_.2} parent=0
    _
  %s8 = ssub.s32 1, %s6
  %s9 = scalar_select 0, %s8, %s6
  loop: start=0, step=1, limit=4
  $region2: #{_lambda_.2} parent=0 // loop_pre_header
    _
  $region3: #{_lambda_.2} parent=0 // loop_header
    %s11 = sphi 0, %s15
    %p12 = scmp.ge.s32.totalorder %s11, 4
    %s18 = sphi 0, %s30
    %s19 = sphi 0, %s26
    %s20 = sphi 0, %s18
    %s21 = sphi 0, %s19
    %s22 = sphi 0, %s20
    %s23 = sphi 0, %s21
    %s35 = sphi 0, %s37
    %s38 = sphi 0, %s35
    %s39 = sphi 0, %s38
    %s55 = sphi 0, %s39
    %s59 = sphi 0, %s59
    %s61 = sphi 0, %s59
    %s62 = sphi 0, %s61
    %s76 = sphi 0, %s62
    %s84 = sphi 0, %s86
    %s87 = sphi 0, %s84
    %s88 = sphi 0, %s87
    %s104 = sphi 0, %s88
    %s112 = sphi 0, %s114
    %s115 = sphi 0, %s112
    %s116 = sphi 0, %s115
    %s132 = sphi 0, %s116
    %s140 = sphi 0, %s142
    %s143 = sphi 0, %s140
    %s144 = sphi 0, %s143
    %s160 = sphi 0, %s144
  $region4: #{_lambda_.2} parent=0 // loop_header_branch
    %14 = sbr.rel (%p12) target = $region8
  $region5: #{_lambda_.2} parent=0 // loop_body
    %s16 = ssub.s32 %s11, 1
    %s17 = ssub.s32 %s11, 2
    %s24 = sadd.s32 1, %s19
    %p25 = scmp.ge.s32.totalorder %s24, 1
    %s26 = scalar_select %p25, 0, %s24
    %s27 = sadd.s32 1, %s18
    %s28 = scalar_select %p25, %s27, %s18
    %p29 = scmp.ge.s32.totalorder %s28, 2
    %s30 = scalar_select %p29, 0, %s28
    %s31 = ssub.s32 %s18, %s30
    %s32 = ssub.s32 %s19, %s26
    %s33 = sor.u32 %s31, %s32
    %p34 = scmp.eq.s32.totalorder %s33, 0
    %s36 = sadd.s32 %s35, 1
    %s37 = scalar_select %p34, %s35, %s36
    %p40 = pneg %p34
    %p41 = scmp.eq.s32.totalorder %s11, 1
    %p42 = por %p40, %p41
    %p43 = scmp.ne.s32.totalorder %s35, %s38
    %p44 = scmp.eq.s32.totalorder %s11, 0
    %p45 = por %p43, %p44
    %p46 = scmp.ne.s32.totalorder %s35, %s38
    %p47 = scmp.eq.s32.totalorder %s16, 1
    %p48 = por %p46, %p47
    %p49 = scmp.ne.s32.totalorder %s38, %s39
    %p50 = scmp.eq.s32.totalorder %s16, 0
    %p51 = por %p49, %p50
    %p52 = scmp.ne.s32.totalorder %s38, %s39
    %p53 = scmp.eq.s32.totalorder %s17, 1
    %p54 = por %p52, %p53
    %p56 = scmp.ne.s32.totalorder %s39, %s55
    %p57 = scmp.eq.s32.totalorder %s17, 0
    %p58 = por %p56, %p57
    %s60 = sadd.s32 %s59, 1
    %p63 = scmp.eq.s32.totalorder %s11, 1
    %p64 = scmp.ne.s32.totalorder %s59, %s61
    %p65 = scmp.eq.s32.totalorder %s11, 0
    %p66 = por %p64, %p65
    %p67 = scmp.ne.s32.totalorder %s59, %s61
    %p68 = scmp.eq.s32.totalorder %s16, 1
    %p69 = por %p67, %p68
    %p70 = scmp.ne.s32.totalorder %s61, %s62
    %p71 = scmp.eq.s32.totalorder %s16, 0
    %p72 = por %p70, %p71
    %p73 = scmp.ne.s32.totalorder %s61, %s62
    %p74 = scmp.eq.s32.totalorder %s17, 1
    %p75 = por %p73, %p74
    %p77 = scmp.ne.s32.totalorder %s62, %s76
    %p78 = scmp.eq.s32.totalorder %s17, 0
    %p79 = por %p77, %p78
    %s80 = ssub.s32 %s18, %s30
    %s81 = ssub.s32 %s19, %s26
    %s82 = sor.u32 %s80, %s81
    %p83 = scmp.eq.s32.totalorder %s82, 0
    %s85 = sadd.s32 %s84, 1
    %s86 = scalar_select %p83, %s84, %s85
    %p89 = pneg %p83
    %p90 = scmp.eq.s32.totalorder %s11, 1
    %p91 = por %p89, %p90
    %p92 = scmp.ne.s32.totalorder %s84, %s87
    %p93 = scmp.eq.s32.totalorder %s11, 0
    %p94 = por %p92, %p93
    %p95 = scmp.ne.s32.totalorder %s84, %s87
    %p96 = scmp.eq.s32.totalorder %s16, 1
    %p97 = por %p95, %p96
    %p98 = scmp.ne.s32.totalorder %s87, %s88
    %p99 = scmp.eq.s32.totalorder %s16, 0
    %p100 = por %p98, %p99
    %p101 = scmp.ne.s32.totalorder %s87, %s88
    %p102 = scmp.eq.s32.totalorder %s17, 1
    %p103 = por %p101, %p102
    %p105 = scmp.ne.s32.totalorder %s88, %s104
    %p106 = scmp.eq.s32.totalorder %s17, 0
    %p107 = por %p105, %p106
    %s108 = ssub.s32 %s18, %s30
    %s109 = ssub.s32 %s19, %s26
    %s110 = sor.u32 %s108, %s109
    %p111 = scmp.eq.s32.totalorder %s110, 0
    %s113 = sadd.s32 %s112, 1
    %s114 = scalar_select %p111, %s112, %s113
    %p117 = pneg %p111
    %p118 = scmp.eq.s32.totalorder %s11, 1
    %p119 = por %p117, %p118
    %p120 = scmp.ne.s32.totalorder %s112, %s115
    %p121 = scmp.eq.s32.totalorder %s11, 0
    %p122 = por %p120, %p121
    %p123 = scmp.ne.s32.totalorder %s112, %s115
    %p124 = scmp.eq.s32.totalorder %s16, 1
    %p125 = por %p123, %p124
    %p126 = scmp.ne.s32.totalorder %s115, %s116
    %p127 = scmp.eq.s32.totalorder %s16, 0
    %p128 = por %p126, %p127
    %p129 = scmp.ne.s32.totalorder %s115, %s116
    %p130 = scmp.eq.s32.totalorder %s17, 1
    %p131 = por %p129, %p130
    %p133 = scmp.ne.s32.totalorder %s116, %s132
    %p134 = scmp.eq.s32.totalorder %s17, 0
    %p135 = por %p133, %p134
    %s136 = ssub.s32 %s18, %s30
    %s137 = ssub.s32 %s19, %s26
    %s138 = sor.u32 %s136, %s137
    %p139 = scmp.eq.s32.totalorder %s138, 0
    %s141 = sadd.s32 %s140, 1
    %s142 = scalar_select %p139, %s140, %s141
    %p145 = pneg %p139
    %p146 = scmp.eq.s32.totalorder %s11, 1
    %p147 = por %p145, %p146
    %p148 = scmp.ne.s32.totalorder %s140, %s143
    %p149 = scmp.eq.s32.totalorder %s11, 0
    %p150 = por %p148, %p149
    %p151 = scmp.ne.s32.totalorder %s140, %s143
    %p152 = scmp.eq.s32.totalorder %s16, 1
    %p153 = por %p151, %p152
    %p154 = scmp.ne.s32.totalorder %s143, %s144
    %p155 = scmp.eq.s32.totalorder %s16, 0
    %p156 = por %p154, %p155
    %p157 = scmp.ne.s32.totalorder %s143, %s144
    %p158 = scmp.eq.s32.totalorder %s17, 1
    %p159 = por %p157, %p158
    %p161 = scmp.ne.s32.totalorder %s144, %s160
    %p162 = scmp.eq.s32.totalorder %s17, 0
    %p163 = por %p161, %p162
    %p164 = scmp.le.s32.totalorder 1, %s11
    %p165 = scmp.lt.s32.totalorder %s11, 3
    %p166 = pnand %p164, %p165
    %p167 = pneg %p166
    // Predicated region
    $region9: #{_lambda_.2} parent=5 // pred_check
      _
    $region10: #{_lambda_.2} parent=5 // pred_check_branch
      %169 = sbr.rel (%p166) target = $region12
    $region11: #{_lambda_.2} parent=5 // pred_region
      %s170 = ssub.s32 %s11, 1
      // Predicated region
      $region13: #{_lambda_.2} parent=11 // pred_check
        %p171 = pneg %p72
      $region14: #{_lambda_.2} parent=11 // pred_check_branch
        %173 = sbr.rel (%p171) target = $region16
      $region15: #{_lambda_.2} parent=11 // pred_region
        _
      $region16: #{_lambda_.2} parent=11 // pred_fallthru
        _
    $region12: #{_lambda_.2} parent=5 // pred_fallthru
      _
    %p174 = scmp.lt.s32.totalorder %s11, 2
    // Predicated region
    $region17: #{_lambda_.2} parent=5 // pred_check
      %p175 = pneg %p174
    $region18: #{_lambda_.2} parent=5 // pred_check_branch
      %177 = sbr.rel (%p175) target = $region20
    $region19: #{_lambda_.2} parent=5 // pred_region
      // Predicated region
      $region21: #{_lambda_.2} parent=19 // pred_check
        %p178 = pneg %p45
      $region22: #{_lambda_.2} parent=19 // pred_check_branch
        %180 = sbr.rel (%p178) target = $region24
      $region23: #{_lambda_.2} parent=19 // pred_region
        %s181 = smul.u32 16, %s19
        %p182 = scmp.lt.s32.totalorder %s18, 1
        %s183 = scalar_select %p182, %s18, 1
        %p184 = scmp.lt.s32.totalorder %s181, 15
        %s185 = scalar_select %p184, %s181, 15
        %s186 = smul.addr %s185, 2
        %s187 = smul.addr %s183, 32
        %s188 = sadd.s32 %s186, %s187
        %s189 = smul.addr %s188, 4
        %s190 = scalar_lea.vmem %s0, %s189
        %s191 = smul.u32 16, %s19
      $region24: #{_lambda_.2} parent=19 // pred_fallthru
        _
    $region20: #{_lambda_.2} parent=5 // pred_fallthru
      _
    %p192 = scmp.le.s32.totalorder 1, %s11
    %p193 = scmp.lt.s32.totalorder %s11, 3
    %p194 = pnand %p192, %p193
    %p195 = pneg %p194
    // Predicated region
    $region25: #{_lambda_.2} parent=5 // pred_check
      _
    $region26: #{_lambda_.2} parent=5 // pred_check_branch
      %197 = sbr.rel (%p194) target = $region28
    $region27: #{_lambda_.2} parent=5 // pred_region
      %s198 = ssub.s32 %s11, 1
      %s199 = smul.u32 16, %s21
      %p200 = scmp.lt.s32.totalorder %s20, 1
      %s201 = scalar_select %p200, %s20, 1
      %p202 = scmp.lt.s32.totalorder %s199, 15
      %s203 = scalar_select %p202, %s199, 15
      %s204 = smul.addr %s203, 2
      %s205 = smul.addr %s201, 32
      %s206 = sadd.s32 %s204, %s205
      %s207 = smul.addr %s206, 4
      %s208 = scalar_lea.vmem %s0, %s207
      %p209 = pneg %p51
      %p210 = pneg %p48
      %p211 = pneg %p72
      %p212 = pneg %p69
      %p213 = pneg %p100
      %p214 = pneg %p97
      %s215 = smul.u32 16, %s21
      %p216 = scmp.lt.s32.totalorder %s20, 1
      %s217 = scalar_select %p216, %s20, 1
      %p218 = scmp.lt.s32.totalorder %s215, 15
      %s219 = scalar_select %p218, %s215, 15
      %s220 = smul.addr %s219, 2
      %s221 = smul.addr %s217, 32
      %s222 = sadd.s32 %s220, %s221
      %s223 = smul.addr %s222, 4
      %s224 = scalar_lea.vmem %s2, %s223
      %p225 = pneg %p128
      %p226 = pneg %p125
      %p227 = scmp.lt.s32.totalorder %s20, 1
      %s228 = scalar_select %p227, %s20, 1
      %p229 = scmp.lt.s32.totalorder %s21, 0
      %s230 = scalar_select %p229, %s21, 0
      %s231 = sadd.s32 %s230, %s228
      %s232 = scalar_lea.vmem %s3, %s231
      %p233 = pneg %p156
      %p234 = pneg %p153
      %p235 = scmp.lt.s32.totalorder %s20, 1
      %s236 = scalar_select %p235, %s20, 1
      %p237 = scmp.lt.s32.totalorder %s21, 0
      %s238 = scalar_select %p237, %s21, 0
      %s239 = sadd.s32 %s238, %s236
      %s240 = scalar_lea.vmem %s4, %s239
      %s241 = smul.u32 16, %s21
      %p242 = scmp.lt.s32.totalorder %s20, 1
      %s243 = scalar_select %p242, %s20, 1
      %p244 = scmp.lt.s32.totalorder %s241, 15
      %s245 = scalar_select %p244, %s241, 15
      %s246 = smul.addr %s245, 2
      %s247 = smul.addr %s243, 32
      %s248 = sadd.s32 %s246, %s247
      %s249 = smul.addr %s248, 4
      %s250 = scalar_lea.vmem %s0, %s249
      %s251 = smul.u32 16, %s21
      %s252 = smul.u32 16, %s21
      %p253 = scmp.lt.s32.totalorder %s20, 1
      %s254 = scalar_select %p253, %s20, 1
      %p255 = scmp.lt.s32.totalorder %s252, 15
      %s256 = scalar_select %p255, %s252, 15
      %s257 = smul.addr %s256, 2
      %s258 = smul.addr %s254, 32
      %s259 = sadd.s32 %s257, %s258
      %s260 = smul.addr %s259, 4
      %s261 = scalar_lea.vmem %s2, %s260
      %s262 = smul.u32 16, %s21
      %p263 = scmp.lt.s32.totalorder %s20, 1
      %s264 = scalar_select %p263, %s20, 1
      %p265 = scmp.lt.s32.totalorder %s21, 0
      %s266 = scalar_select %p265, %s21, 0
      %s267 = sadd.s32 %s266, %s264
      %s268 = scalar_lea.vmem %s3, %s267
      %p269 = scmp.lt.s32.totalorder %s20, 1
      %s270 = scalar_select %p269, %s20, 1
      %p271 = scmp.lt.s32.totalorder %s21, 0
      %s272 = scalar_select %p271, %s21, 0
      %s273 = sadd.s32 %s272, %s270
      %s274 = scalar_lea.vmem %s4, %s273
      %v276 = vld [vmem:[%s250] sm:$0xf]
      %v277 = vld [vmem:[%s250 + $0x4] sm:$0xf]
      %v278 = vld [vmem:[%s250 + $0x8] sm:$0xf]
      %v279 = vld [vmem:[%s250 + $0xc] sm:$0xf]
      %v280 = vld [vmem:[%s250 + $0x10] sm:$0xf]
      %v281 = vld [vmem:[%s250 + $0x14] sm:$0xf]
      %v282 = vld [vmem:[%s250 + $0x18] sm:$0xf]
      %v283 = vld [vmem:[%s250 + $0x1c] sm:$0xf]
      %v284 = vld [vmem:[%s250 + $0x20] sm:$0xf]
      %v285 = vld [vmem:[%s250 + $0x24] sm:$0xf]
      %v286 = vld [vmem:[%s250 + $0x28] sm:$0xf]
      %v287 = vld [vmem:[%s250 + $0x2c] sm:$0xf]
      %v288 = vld [vmem:[%s250 + $0x30] sm:$0xf]
      %v289 = vld [vmem:[%s250 + $0x34] sm:$0xf]
      %v290 = vld [vmem:[%s250 + $0x38] sm:$0xf]
      %v291 = vld [vmem:[%s250 + $0x3c] sm:$0xf]
      %v292 = vld [vmem:[%s250 + $0x40] sm:$0xf]
      %v293 = vld [vmem:[%s250 + $0x44] sm:$0xf]
      %v294 = vld [vmem:[%s250 + $0x48] sm:$0xf]
      %v295 = vld [vmem:[%s250 + $0x4c] sm:$0xf]
      %v296 = vld [vmem:[%s250 + $0x50] sm:$0xf]
      %v297 = vld [vmem:[%s250 + $0x54] sm:$0xf]
      %v298 = vld [vmem:[%s250 + $0x58] sm:$0xf]
      %v299 = vld [vmem:[%s250 + $0x5c] sm:$0xf]
      %v300 = vld [vmem:[%s250 + $0x60] sm:$0xf]
      %v301 = vld [vmem:[%s250 + $0x64] sm:$0xf]
      %v302 = vld [vmem:[%s250 + $0x68] sm:$0xf]
      %v303 = vld [vmem:[%s250 + $0x6c] sm:$0xf]
      %v304 = vld [vmem:[%s250 + $0x70] sm:$0xf]
      %v305 = vld [vmem:[%s250 + $0x74] sm:$0xf]
      %v306 = vld [vmem:[%s250 + $0x78] sm:$0xf]
      %v307 = vld [vmem:[%s250 + $0x7c] sm:$0xf]
      %v308 = vld [vmem:[%s1] sm:$0xf]
      %v309 = vld [vmem:[%s1 + $0x4] sm:$0xf]
      %v310 = vld [vmem:[%s1 + $0x8] sm:$0xf]
      %v311 = vld [vmem:[%s1 + $0xc] sm:$0xf]
      %v312 = vld [vmem:[%s1 + $0x10] sm:$0x3]
      %v345 = vunpack.c.l.b16 %v276
      %v346 = vunpack.c.l.b16 %v277
      %v347 = vunpack.c.l.b16 %v278
      %v348 = vunpack.c.l.b16 %v279
      %v349 = vunpack.c.l.b16 %v280
      %v350 = vunpack.c.l.b16 %v281
      %v351 = vunpack.c.l.b16 %v282
      %v352 = vunpack.c.l.b16 %v283
      %v353 = vunpack.c.l.b16 %v284
      %v354 = vunpack.c.l.b16 %v285
      %v355 = vunpack.c.l.b16 %v286
      %v356 = vunpack.c.l.b16 %v287
      %v357 = vunpack.c.l.b16 %v288
      %v358 = vunpack.c.l.b16 %v289
      %v359 = vunpack.c.l.b16 %v290
      %v360 = vunpack.c.l.b16 %v291
      %v361 = vunpack.c.l.b16 %v292
      %v362 = vunpack.c.l.b16 %v293
      %v363 = vunpack.c.l.b16 %v294
      %v364 = vunpack.c.l.b16 %v295
      %v365 = vunpack.c.l.b16 %v296
      %v366 = vunpack.c.l.b16 %v297
      %v367 = vunpack.c.l.b16 %v298
      %v368 = vunpack.c.l.b16 %v299
      %v369 = vunpack.c.l.b16 %v300
      %v370 = vunpack.c.l.b16 %v301
      %v371 = vunpack.c.l.b16 %v302
      %v372 = vunpack.c.l.b16 %v303
      %v373 = vunpack.c.l.b16 %v304
      %v374 = vunpack.c.l.b16 %v305
      %v375 = vunpack.c.l.b16 %v306
      %v376 = vunpack.c.l.b16 %v307
      %v377 = vpack.c.b16 %v346, %v345
      %v378 = vpack.c.b16 %v348, %v347
      %v379 = vpack.c.b16 %v350, %v349
      %v380 = vpack.c.b16 %v352, %v351
      %v381 = vpack.c.b16 %v354, %v353
      %v382 = vpack.c.b16 %v356, %v355
      %v383 = vpack.c.b16 %v358, %v357
      %v384 = vpack.c.b16 %v360, %v359
      %v385 = vpack.c.b16 %v362, %v361
      %v386 = vpack.c.b16 %v364, %v363
      %v387 = vpack.c.b16 %v366, %v365
      %v388 = vpack.c.b16 %v368, %v367
      %v389 = vpack.c.b16 %v370, %v369
      %v390 = vpack.c.b16 %v372, %v371
      %v391 = vpack.c.b16 %v374, %v373
      %v392 = vpack.c.b16 %v376, %v375
      %v398 = vunpack.c.l.b16 %v308
      %v399 = vunpack.c.l.b16 %v309
      %v400 = vunpack.c.l.b16 %v310
      %v401 = vunpack.c.l.b16 %v311
      %v402 = vunpack.c.l.b16 %v312
      %v403 = vpack.c.b16 %v399, %v398
      %v404 = vpack.c.b16 %v401, %v400
      %v405 = vpack.c.b16 %v402, %v402
      %vm408 = vcmask 293888
      %v410 = vsel %vm408, %v377, 0
      %v413 = vsel %vm408, %v378, 0
      %v416 = vsel %vm408, %v379, 0
      %v419 = vsel %vm408, %v380, 0
      %v422 = vsel %vm408, %v381, 0
      %v425 = vsel %vm408, %v382, 0
      %v428 = vsel %vm408, %v383, 0
      %v431 = vsel %vm408, %v384, 0
      %v434 = vsel %vm408, %v385, 0
      %v437 = vsel %vm408, %v386, 0
      %v440 = vsel %vm408, %v387, 0
      %v443 = vsel %vm408, %v388, 0
      %v446 = vsel %vm408, %v389, 0
      %v449 = vsel %vm408, %v390, 0
      %v452 = vsel %vm408, %v391, 0
      %v455 = vsel %vm408, %v392, 0
      %vm457 = vcmask 1041408
      %v459 = vsel %vm457, %v405, 0
      %461 = vmatprep.subr.bf16.mxu0 0
      %462 = vmatpush1.bf16.msra.mxu0 %v403
      %463 = vmatprep.subr.bf16.mxu0 0
      %464 = vmatpush1.bf16.msra.mxu0 %v404
      %465 = vmatprep.subr.bf16.mxu0 0
      %466 = vmatpush1.bf16.msra.mxu0 %v459
      %467 = vmatprep.subr.bf16.mxu0 0
      %468 = vmatpush1.bf16.msra.mxu0 0
      %469 = vmatprep.subr.bf16.mxu0 0
      %470 = vmatpush1.bf16.msra.mxu0 0
      %471 = vmatprep.subr.bf16.mxu0 0
      %472 = vmatpush1.bf16.msra.mxu0 0
      %473 = vmatprep.subr.bf16.mxu0 0
      %474 = vmatpush1.bf16.msra.mxu0 0
      %475 = vmatprep.subr.bf16.mxu0 0
      %476 = vmatpush1.bf16.msra.mxu0 0
      %477 = vmatprep.subr.bf16.mxu0 0
      %478 = vmatpush1.bf16.msra.mxu0 0
      %479 = vmatprep.subr.bf16.mxu0 0
      %480 = vmatpush1.bf16.msra.mxu0 0
      %481 = vmatprep.subr.bf16.mxu0 0
      %482 = vmatpush1.bf16.msra.mxu0 0
      %483 = vmatprep.subr.bf16.mxu0 0
      %484 = vmatpush1.bf16.msra.mxu0 0
      %485 = vmatprep.subr.bf16.mxu0 0
      %486 = vmatpush1.bf16.msra.mxu0 0
      %487 = vmatprep.subr.bf16.mxu0 0
      %488 = vmatpush1.bf16.msra.mxu0 0
      %489 = vmatprep.subr.bf16.mxu0 0
      %490 = vmatpush1.bf16.msra.mxu0 0
      %491 = vmatprep.subr.bf16.mxu0 0
      %492 = vmatpush1.bf16.msra.mxu0 0
      %493 = vmatprep.mubr.bf16.mxu0 0
      %494 = vmatmul.mubr.bf16.gmra.mrb[0].mxu0 %v410
      %v495 = vpop.f32.mrb[0].mxu0
      %v496 = vadd.f32 0.0, %v495
      %v497 = vpop.f32.mrb[0].mxu0
      %v498 = vpop.f32.mrb[0].mxu0
      %v499 = vadd.f32 0.0, %v498
      %v500 = vpop.f32.mrb[0].mxu0
      %501 = vmatprep.mubr.bf16.mxu0 0
      %502 = vmatmul.mubr.bf16.gmra.mrb[0].mxu0 %v413
      %v503 = vpop.f32.mrb[0].mxu0
      %v504 = vadd.f32 0.0, %v503
      %v505 = vpop.f32.mrb[0].mxu0
      %v506 = vpop.f32.mrb[0].mxu0
      %v507 = vadd.f32 0.0, %v506
      %v508 = vpop.f32.mrb[0].mxu0
      %509 = vmatprep.mubr.bf16.mxu0 0
      %510 = vmatmul.mubr.bf16.gmra.mrb[0].mxu0 %v416
      %v511 = vpop.f32.mrb[0].mxu0
      %v512 = vadd.f32 0.0, %v511
      %v513 = vpop.f32.mrb[0].mxu0
      %v514 = vpop.f32.mrb[0].mxu0
      %v515 = vadd.f32 0.0, %v514
      %v516 = vpop.f32.mrb[0].mxu0
      %517 = vmatprep.mubr.bf16.mxu0 0
      %518 = vmatmul.mubr.bf16.gmra.mrb[0].mxu0 %v419
      %v519 = vpop.f32.mrb[0].mxu0
      %v520 = vadd.f32 0.0, %v519
      %v521 = vpop.f32.mrb[0].mxu0
      %v522 = vpop.f32.mrb[0].mxu0
      %v523 = vadd.f32 0.0, %v522
      %v524 = vpop.f32.mrb[0].mxu0
      %525 = vmatprep.mubr.bf16.mxu0 0
      %526 = vmatmul.mubr.bf16.gmra.mrb[0].mxu0 %v422
      %v527 = vpop.f32.mrb[0].mxu0
      %v528 = vadd.f32 0.0, %v527
      %v529 = vpop.f32.mrb[0].mxu0
      %v530 = vpop.f32.mrb[0].mxu0
      %v531 = vadd.f32 0.0, %v530
      %v532 = vpop.f32.mrb[0].mxu0
      %533 = vmatprep.mubr.bf16.mxu0 0
      %534 = vmatmul.mubr.bf16.gmra.mrb[0].mxu0 %v425
      %v535 = vpop.f32.mrb[0].mxu0
      %v536 = vadd.f32 0.0, %v535
      %v537 = vpop.f32.mrb[0].mxu0
      %v538 = vpop.f32.mrb[0].mxu0
      %v539 = vadd.f32 0.0, %v538
      %v540 = vpop.f32.mrb[0].mxu0
      %541 = vmatprep.mubr.bf16.mxu0 0
      %542 = vmatmul.mubr.bf16.gmra.mrb[0].mxu0 %v428
      %v543 = vpop.f32.mrb[0].mxu0
      %v544 = vadd.f32 0.0, %v543
      %v545 = vpop.f32.mrb[0].mxu0
      %v546 = vpop.f32.mrb[0].mxu0
      %v547 = vadd.f32 0.0, %v546
      %v548 = vpop.f32.mrb[0].mxu0
      %549 = vmatprep.mubr.bf16.mxu0 0
      %550 = vmatmul.mubr.bf16.gmra.mrb[0].mxu0 %v431
      %v551 = vpop.f32.mrb[0].mxu0
      %v552 = vadd.f32 0.0, %v551
      %v553 = vpop.f32.mrb[0].mxu0
      %v554 = vpop.f32.mrb[0].mxu0
      %v555 = vadd.f32 0.0, %v554
      %v556 = vpop.f32.mrb[0].mxu0
      %557 = vmatprep.mubr.bf16.mxu0 0
      %558 = vmatmul.mubr.bf16.gmra.mrb[0].mxu0 %v434
      %v559 = vpop.f32.mrb[0].mxu0
      %v560 = vadd.f32 0.0, %v559
      %v561 = vpop.f32.mrb[0].mxu0
      %v562 = vpop.f32.mrb[0].mxu0
      %v563 = vadd.f32 0.0, %v562
      %v564 = vpop.f32.mrb[0].mxu0
      %565 = vmatprep.mubr.bf16.mxu0 0
      %566 = vmatmul.mubr.bf16.gmra.mrb[0].mxu0 %v437
      %v567 = vpop.f32.mrb[0].mxu0
      %v568 = vadd.f32 0.0, %v567
      %v569 = vpop.f32.mrb[0].mxu0
      %v570 = vpop.f32.mrb[0].mxu0
      %v571 = vadd.f32 0.0, %v570
      %v572 = vpop.f32.mrb[0].mxu0
      %573 = vmatprep.mubr.bf16.mxu0 0
      %574 = vmatmul.mubr.bf16.gmra.mrb[0].mxu0 %v440
      %v575 = vpop.f32.mrb[0].mxu0
      %v576 = vadd.f32 0.0, %v575
      %v577 = vpop.f32.mrb[0].mxu0
      %v578 = vpop.f32.mrb[0].mxu0
      %v579 = vadd.f32 0.0, %v578
      %v580 = vpop.f32.mrb[0].mxu0
      %581 = vmatprep.mubr.bf16.mxu0 0
      %582 = vmatmul.mubr.bf16.gmra.mrb[0].mxu0 %v443
      %v583 = vpop.f32.mrb[0].mxu0
      %v584 = vadd.f32 0.0, %v583
      %v585 = vpop.f32.mrb[0].mxu0
      %v586 = vpop.f32.mrb[0].mxu0
      %v587 = vadd.f32 0.0, %v586
      %v588 = vpop.f32.mrb[0].mxu0
      %589 = vmatprep.mubr.bf16.mxu0 0
      %590 = vmatmul.mubr.bf16.gmra.mrb[0].mxu0 %v446
      %v591 = vpop.f32.mrb[0].mxu0
      %v592 = vadd.f32 0.0, %v591
      %v593 = vpop.f32.mrb[0].mxu0
      %v594 = vpop.f32.mrb[0].mxu0
      %v595 = vadd.f32 0.0, %v594
      %v596 = vpop.f32.mrb[0].mxu0
      %597 = vmatprep.mubr.bf16.mxu0 0
      %598 = vmatmul.mubr.bf16.gmra.mrb[0].mxu0 %v449
      %v599 = vpop.f32.mrb[0].mxu0
      %v600 = vadd.f32 0.0, %v599
      %v601 = vpop.f32.mrb[0].mxu0
      %v602 = vpop.f32.mrb[0].mxu0
      %v603 = vadd.f32 0.0, %v602
      %v604 = vpop.f32.mrb[0].mxu0
      %605 = vmatprep.mubr.bf16.mxu0 0
      %606 = vmatmul.mubr.bf16.gmra.mrb[0].mxu0 %v452
      %v607 = vpop.f32.mrb[0].mxu0
      %v608 = vadd.f32 0.0, %v607
      %v609 = vpop.f32.mrb[0].mxu0
      %v610 = vpop.f32.mrb[0].mxu0
      %v611 = vadd.f32 0.0, %v610
      %v612 = vpop.f32.mrb[0].mxu0
      %613 = vmatprep.mubr.bf16.mxu0 0
      %614 = vmatmul.mubr.bf16.gmra.mrb[0].mxu0 %v455
      %v615 = vpop.f32.mrb[0].mxu0
      %v616 = vadd.f32 0.0, %v615
      %v617 = vpop.f32.mrb[0].mxu0
      %v618 = vpop.f32.mrb[0].mxu0
      %v619 = vadd.f32 0.0, %v618
      %v620 = vpop.f32.mrb[0].mxu0
      %621 = vdwg.mxu0
      %v622 = vmax.f32 %v496, 0.0
      %v623 = vmax.f32 %v499, 0.0
      %v624 = vmax.f32 %v504, 0.0
      %v625 = vmax.f32 %v507, 0.0
      %v626 = vmax.f32 %v512, 0.0
      %v627 = vmax.f32 %v515, 0.0
      %v628 = vmax.f32 %v520, 0.0
      %v629 = vmax.f32 %v523, 0.0
      %v630 = vmax.f32 %v528, 0.0
      %v631 = vmax.f32 %v531, 0.0
      %v632 = vmax.f32 %v536, 0.0
      %v633 = vmax.f32 %v539, 0.0
      %v634 = vmax.f32 %v544, 0.0
      %v635 = vmax.f32 %v547, 0.0
      %v636 = vmax.f32 %v552, 0.0
      %v637 = vmax.f32 %v555, 0.0
      %v638 = vmax.f32 %v560, 0.0
      %v639 = vmax.f32 %v563, 0.0
      %v640 = vmax.f32 %v568, 0.0
      %v641 = vmax.f32 %v571, 0.0
      %v642 = vmax.f32 %v576, 0.0
      %v643 = vmax.f32 %v579, 0.0
      %v644 = vmax.f32 %v584, 0.0
      %v645 = vmax.f32 %v587, 0.0
      %v646 = vmax.f32 %v592, 0.0
      %v647 = vmax.f32 %v595, 0.0
      %v648 = vmax.f32 %v600, 0.0
      %v649 = vmax.f32 %v603, 0.0
      %v650 = vmax.f32 %v608, 0.0
      %v651 = vmax.f32 %v611, 0.0
      %v652 = vmax.f32 %v616, 0.0
      %v653 = vmax.f32 %v619, 0.0
      %v654 = vpack.c.bf16 %v623, %v622
      %v655 = vpack.c.bf16 %v625, %v624
      %v656 = vpack.c.bf16 %v627, %v626
      %v657 = vpack.c.bf16 %v629, %v628
      %v658 = vpack.c.bf16 %v631, %v630
      %v659 = vpack.c.bf16 %v633, %v632
      %v660 = vpack.c.bf16 %v635, %v634
      %v661 = vpack.c.bf16 %v637, %v636
      %v662 = vpack.c.bf16 %v639, %v638
      %v663 = vpack.c.bf16 %v641, %v640
      %v664 = vpack.c.bf16 %v643, %v642
      %v665 = vpack.c.bf16 %v645, %v644
      %v666 = vpack.c.bf16 %v647, %v646
      %v667 = vpack.c.bf16 %v649, %v648
      %v668 = vpack.c.bf16 %v651, %v650
      %v669 = vpack.c.bf16 %v653, %v652
      %v686 = vunpack.c.l.b16 %v654
      %v687 = vunpack.c.h.b16 %v654
      %v688 = vunpack.c.l.b16 %v655
      %v689 = vunpack.c.h.b16 %v655
      %v690 = vunpack.c.l.b16 %v656
      %v691 = vunpack.c.h.b16 %v656
      %v692 = vunpack.c.l.b16 %v657
      %v693 = vunpack.c.h.b16 %v657
      %v694 = vunpack.c.l.b16 %v658
      %v695 = vunpack.c.h.b16 %v658
      %v696 = vunpack.c.l.b16 %v659
      %v697 = vunpack.c.h.b16 %v659
      %v698 = vunpack.c.l.b16 %v660
      %v699 = vunpack.c.h.b16 %v660
      %v700 = vunpack.c.l.b16 %v661
      %v701 = vunpack.c.h.b16 %v661
      %v702 = vunpack.c.l.b16 %v662
      %v703 = vunpack.c.h.b16 %v662
      %v704 = vunpack.c.l.b16 %v663
      %v705 = vunpack.c.h.b16 %v663
      %v706 = vunpack.c.l.b16 %v664
      %v707 = vunpack.c.h.b16 %v664
      %v708 = vunpack.c.l.b16 %v665
      %v709 = vunpack.c.h.b16 %v665
      %v710 = vunpack.c.l.b16 %v666
      %v711 = vunpack.c.h.b16 %v666
      %v712 = vunpack.c.l.b16 %v667
      %v713 = vunpack.c.h.b16 %v667
      %v714 = vunpack.c.l.b16 %v668
      %v715 = vunpack.c.h.b16 %v668
      %v716 = vunpack.c.l.b16 %v669
      %v717 = vunpack.c.h.b16 %v669
      %v718 = vpack.c.b16 %v686, %v686
      %v719 = vpack.c.b16 %v687, %v687
      %v720 = vpack.c.b16 %v688, %v688
      %v721 = vpack.c.b16 %v689, %v689
      %v722 = vpack.c.b16 %v690, %v690
      %v723 = vpack.c.b16 %v691, %v691
      %v724 = vpack.c.b16 %v692, %v692
      %v725 = vpack.c.b16 %v693, %v693
      %v726 = vpack.c.b16 %v694, %v694
      %v727 = vpack.c.b16 %v695, %v695
      %v728 = vpack.c.b16 %v696, %v696
      %v729 = vpack.c.b16 %v697, %v697
      %v730 = vpack.c.b16 %v698, %v698
      %v731 = vpack.c.b16 %v699, %v699
      %v732 = vpack.c.b16 %v700, %v700
      %v733 = vpack.c.b16 %v701, %v701
      %v734 = vpack.c.b16 %v702, %v702
      %v735 = vpack.c.b16 %v703, %v703
      %v736 = vpack.c.b16 %v704, %v704
      %v737 = vpack.c.b16 %v705, %v705
      %v738 = vpack.c.b16 %v706, %v706
      %v739 = vpack.c.b16 %v707, %v707
      %v740 = vpack.c.b16 %v708, %v708
      %v741 = vpack.c.b16 %v709, %v709
      %v742 = vpack.c.b16 %v710, %v710
      %v743 = vpack.c.b16 %v711, %v711
      %v744 = vpack.c.b16 %v712, %v712
      %v745 = vpack.c.b16 %v713, %v713
      %v746 = vpack.c.b16 %v714, %v714
      %v747 = vpack.c.b16 %v715, %v715
      %v748 = vpack.c.b16 %v716, %v716
      %v749 = vpack.c.b16 %v717, %v717
      %782 = vst [vmem:[%s261] sm:$0xf] %v718
      %783 = vst [vmem:[%s261 + $0x4] sm:$0xf] %v719
      %784 = vst [vmem:[%s261 + $0x8] sm:$0xf] %v720
      %785 = vst [vmem:[%s261 + $0xc] sm:$0xf] %v721
      %786 = vst [vmem:[%s261 + $0x10] sm:$0xf] %v722
      %787 = vst [vmem:[%s261 + $0x14] sm:$0xf] %v723
      %788 = vst [vmem:[%s261 + $0x18] sm:$0xf] %v724
      %789 = vst [vmem:[%s261 + $0x1c] sm:$0xf] %v725
      %790 = vst [vmem:[%s261 + $0x20] sm:$0xf] %v726
      %791 = vst [vmem:[%s261 + $0x24] sm:$0xf] %v727
      %792 = vst [vmem:[%s261 + $0x28] sm:$0xf] %v728
      %793 = vst [vmem:[%s261 + $0x2c] sm:$0xf] %v729
      %794 = vst [vmem:[%s261 + $0x30] sm:$0xf] %v730
      %795 = vst [vmem:[%s261 + $0x34] sm:$0xf] %v731
      %796 = vst [vmem:[%s261 + $0x38] sm:$0xf] %v732
      %797 = vst [vmem:[%s261 + $0x3c] sm:$0xf] %v733
      %798 = vst [vmem:[%s261 + $0x40] sm:$0xf] %v734
      %799 = vst [vmem:[%s261 + $0x44] sm:$0xf] %v735
      %800 = vst [vmem:[%s261 + $0x48] sm:$0xf] %v736
      %801 = vst [vmem:[%s261 + $0x4c] sm:$0xf] %v737
      %802 = vst [vmem:[%s261 + $0x50] sm:$0xf] %v738
      %803 = vst [vmem:[%s261 + $0x54] sm:$0xf] %v739
      %804 = vst [vmem:[%s261 + $0x58] sm:$0xf] %v740
      %805 = vst [vmem:[%s261 + $0x5c] sm:$0xf] %v741
      %806 = vst [vmem:[%s261 + $0x60] sm:$0xf] %v742
      %807 = vst [vmem:[%s261 + $0x64] sm:$0xf] %v743
      %808 = vst [vmem:[%s261 + $0x68] sm:$0xf] %v744
      %809 = vst [vmem:[%s261 + $0x6c] sm:$0xf] %v745
      %810 = vst [vmem:[%s261 + $0x70] sm:$0xf] %v746
      %811 = vst [vmem:[%s261 + $0x74] sm:$0xf] %v747
      %812 = vst [vmem:[%s261 + $0x78] sm:$0xf] %v748
      %813 = vst [vmem:[%s261 + $0x7c] sm:$0xf] %v749
      %v814 = vadd.f32 %v622, %v623
      %v815 = vadd.f32 %v814, %v624
      %v816 = vadd.f32 %v815, %v625
      %v817 = vadd.f32 %v816, %v626
      %v818 = vadd.f32 %v817, %v627
      %v819 = vadd.f32 %v818, %v628
      %v820 = vadd.f32 %v819, %v629
      %v821 = vadd.f32 %v820, %v630
      %v822 = vadd.f32 %v821, %v631
      %v823 = vadd.f32 %v822, %v632
      %v824 = vadd.f32 %v823, %v633
      %v825 = vadd.f32 %v824, %v634
      %v826 = vadd.f32 %v825, %v635
      %v827 = vadd.f32 %v826, %v636
      %v828 = vadd.f32 %v827, %v637
      %v829 = vadd.f32 %v828, %v638
      %v830 = vadd.f32 %v829, %v639
      %v831 = vadd.f32 %v830, %v640
      %v832 = vadd.f32 %v831, %v641
      %v833 = vadd.f32 %v832, %v642
      %v834 = vadd.f32 %v833, %v643
      %v835 = vadd.f32 %v834, %v644
      %v836 = vadd.f32 %v835, %v645
      %v837 = vadd.f32 %v836, %v646
      %v838 = vadd.f32 %v837, %v647
      %v839 = vadd.f32 %v838, %v648
      %v840 = vadd.f32 %v839, %v649
      %v841 = vadd.f32 %v840, %v650
      %v842 = vadd.f32 %v841, %v651
      %v843 = vadd.f32 %v842, %v652
      %v844 = vadd.f32 %v843, %v653
      %v845 = vrot.slane %v844, 4
      %v846 = vadd.f32 %v844, %v845
      %v847 = vrot.slane %v846, 2
      %v848 = vadd.f32 %v846, %v847
      %v849 = vrot.slane %v848, 1
      %v850 = vadd.f32 %v848, %v849
      %851 = vst [vmem:[%s268] sm:$0x1] %v850
      %v852 = vmul.f32 %v622, %v622
      %v853 = vmul.f32 %v623, %v623
      %v854 = vmul.f32 %v624, %v624
      %v855 = vmul.f32 %v625, %v625
      %v856 = vmul.f32 %v626, %v626
      %v857 = vmul.f32 %v627, %v627
      %v858 = vmul.f32 %v628, %v628
      %v859 = vmul.f32 %v629, %v629
      %v860 = vmul.f32 %v630, %v630
      %v861 = vmul.f32 %v631, %v631
      %v862 = vmul.f32 %v632, %v632
      %v863 = vmul.f32 %v633, %v633
      %v864 = vmul.f32 %v634, %v634
      %v865 = vmul.f32 %v635, %v635
      %v866 = vmul.f32 %v636, %v636
      %v867 = vmul.f32 %v637, %v637
      %v868 = vmul.f32 %v638, %v638
      %v869 = vmul.f32 %v639, %v639
      %v870 = vmul.f32 %v640, %v640
      %v871 = vmul.f32 %v641, %v641
      %v872 = vmul.f32 %v642, %v642
      %v873 = vmul.f32 %v643, %v643
      %v874 = vmul.f32 %v644, %v644
      %v875 = vmul.f32 %v645, %v645
      %v876 = vmul.f32 %v646, %v646
      %v877 = vmul.f32 %v647, %v647
      %v878 = vmul.f32 %v648, %v648
      %v879 = vmul.f32 %v649, %v649
      %v880 = vmul.f32 %v650, %v650
      %v881 = vmul.f32 %v651, %v651
      %v882 = vmul.f32 %v652, %v652
      %v883 = vmul.f32 %v653, %v653
      %v884 = vadd.f32 %v852, %v853
      %v885 = vadd.f32 %v884, %v854
      %v886 = vadd.f32 %v885, %v855
      %v887 = vadd.f32 %v886, %v856
      %v888 = vadd.f32 %v887, %v857
      %v889 = vadd.f32 %v888, %v858
      %v890 = vadd.f32 %v889, %v859
      %v891 = vadd.f32 %v890, %v860
      %v892 = vadd.f32 %v891, %v861
      %v893 = vadd.f32 %v892, %v862
      %v894 = vadd.f32 %v893, %v863
      %v895 = vadd.f32 %v894, %v864
      %v896 = vadd.f32 %v895, %v865
      %v897 = vadd.f32 %v896, %v866
      %v898 = vadd.f32 %v897, %v867
      %v899 = vadd.f32 %v898, %v868
      %v900 = vadd.f32 %v899, %v869
      %v901 = vadd.f32 %v900, %v870
      %v902 = vadd.f32 %v901, %v871
      %v903 = vadd.f32 %v902, %v872
      %v904 = vadd.f32 %v903, %v873
      %v905 = vadd.f32 %v904, %v874
      %v906 = vadd.f32 %v905, %v875
      %v907 = vadd.f32 %v906, %v876
      %v908 = vadd.f32 %v907, %v877
      %v909 = vadd.f32 %v908, %v878
      %v910 = vadd.f32 %v909, %v879
      %v911 = vadd.f32 %v910, %v880
      %v912 = vadd.f32 %v911, %v881
      %v913 = vadd.f32 %v912, %v882
      %v914 = vadd.f32 %v913, %v883
      %v915 = vrot.slane %v914, 4
      %v916 = vadd.f32 %v914, %v915
      %v917 = vrot.slane %v916, 2
      %v918 = vadd.f32 %v916, %v917
      %v919 = vrot.slane %v918, 1
      %v920 = vadd.f32 %v918, %v919
      %921 = vst [vmem:[%s274] sm:$0x1] %v920
      %s922 = smul.u32 16, %s21
      %p923 = scmp.lt.s32.totalorder %s20, 1
      %s924 = scalar_select %p923, %s20, 1
      %p925 = scmp.lt.s32.totalorder %s922, 15
      %s926 = scalar_select %p925, %s922, 15
      %s927 = smul.addr %s926, 2
      %s928 = smul.addr %s924, 32
      %s929 = sadd.s32 %s927, %s928
      %s930 = smul.addr %s929, 4
      %s931 = scalar_lea.vmem %s2, %s930
      %p932 = scmp.lt.s32.totalorder %s20, 1
      %s933 = scalar_select %p932, %s20, 1
      %p934 = scmp.lt.s32.totalorder %s21, 0
      %s935 = scalar_select %p934, %s21, 0
      %s936 = sadd.s32 %s935, %s933
      %s937 = scalar_lea.vmem %s3, %s936
      %p938 = scmp.lt.s32.totalorder %s20, 1
      %s939 = scalar_select %p938, %s20, 1
      %p940 = scmp.lt.s32.totalorder %s21, 0
      %s941 = scalar_select %p940, %s21, 0
      %s942 = sadd.s32 %s941, %s939
      %s943 = scalar_lea.vmem %s4, %s942
      // Predicated region
      $region29: #{_lambda_.2} parent=27 // pred_check
        %p944 = pneg %p97
      $region30: #{_lambda_.2} parent=27 // pred_check_branch
        %946 = sbr.rel (%p944) target = $region32
      $region31: #{_lambda_.2} parent=27 // pred_region
        %s947 = smul.u32 16, %s21
      $region32: #{_lambda_.2} parent=27 // pred_fallthru
        _
      // Predicated region
      $region33: #{_lambda_.2} parent=27 // pred_check
        %p948 = pneg %p125
      $region34: #{_lambda_.2} parent=27 // pred_check_branch
        %950 = sbr.rel (%p948) target = $region36
      $region35: #{_lambda_.2} parent=27 // pred_region
        _
      $region36: #{_lambda_.2} parent=27 // pred_fallthru
        _
      // Predicated region
      $region37: #{_lambda_.2} parent=27 // pred_check
        %p951 = pneg %p153
      $region38: #{_lambda_.2} parent=27 // pred_check_branch
        %953 = sbr.rel (%p951) target = $region40
      $region39: #{_lambda_.2} parent=27 // pred_region
        _
      $region40: #{_lambda_.2} parent=27 // pred_fallthru
        _
    $region28: #{_lambda_.2} parent=5 // pred_fallthru
      _
    %p954 = scmp.le.s32.totalorder 2, %s11
    // Predicated region
    $region41: #{_lambda_.2} parent=5 // pred_check
      %p955 = pneg %p954
    $region42: #{_lambda_.2} parent=5 // pred_check_branch
      %957 = sbr.rel (%p955) target = $region44
    $region43: #{_lambda_.2} parent=5 // pred_region
      %s958 = ssub.s32 %s11, 2
      // Predicated region
      $region45: #{_lambda_.2} parent=43 // pred_check
        %p959 = pneg %p103
      $region46: #{_lambda_.2} parent=43 // pred_check_branch
        %961 = sbr.rel (%p959) target = $region48
      $region47: #{_lambda_.2} parent=43 // pred_region
        %s962 = smul.u32 16, %s23
        %p963 = scmp.lt.s32.totalorder %s22, 1
        %s964 = scalar_select %p963, %s22, 1
        %p965 = scmp.lt.s32.totalorder %s962, 15
        %s966 = scalar_select %p965, %s962, 15
        %s967 = smul.addr %s966, 2
        %s968 = smul.addr %s964, 32
        %s969 = sadd.s32 %s967, %s968
        %s970 = smul.addr %s969, 4
        %s971 = scalar_lea.vmem %s2, %s970
      $region48: #{_lambda_.2} parent=43 // pred_fallthru
        _
      // Predicated region
      $region49: #{_lambda_.2} parent=43 // pred_check
        %p972 = pneg %p131
      $region50: #{_lambda_.2} parent=43 // pred_check_branch
        %974 = sbr.rel (%p972) target = $region52
      $region51: #{_lambda_.2} parent=43 // pred_region
        %p975 = scmp.lt.s32.totalorder %s22, 1
        %s976 = scalar_select %p975, %s22, 1
        %p977 = scmp.lt.s32.totalorder %s23, 0
        %s978 = scalar_select %p977, %s23, 0
        %s979 = sadd.s32 %s978, %s976
        %s980 = scalar_lea.vmem %s3, %s979
      $region52: #{_lambda_.2} parent=43 // pred_fallthru
        _
      // Predicated region
      $region53: #{_lambda_.2} parent=43 // pred_check
        %p981 = pneg %p159
      $region54: #{_lambda_.2} parent=43 // pred_check_branch
        %983 = sbr.rel (%p981) target = $region56
      $region55: #{_lambda_.2} parent=43 // pred_region
        %p984 = scmp.lt.s32.totalorder %s22, 1
        %s985 = scalar_select %p984, %s22, 1
        %p986 = scmp.lt.s32.totalorder %s23, 0
        %s987 = scalar_select %p986, %s23, 0
        %s988 = sadd.s32 %s987, %s985
        %s989 = scalar_lea.vmem %s4, %s988
      $region56: #{_lambda_.2} parent=43 // pred_fallthru
        _
    $region44: #{_lambda_.2} parent=5 // pred_fallthru
      _
  $region6: #{_lambda_.2} parent=0 // loop_footer
    %s15 = sadd.s32 1, %s11
  $region7: #{_lambda_.2} parent=0 // loop_footer_branch
    %10 = sbr.rel target = $region3
  $region8: #{_lambda_.2} parent=0 // loop_exit
    _

</llo_original>
